<compile_context>
chip_gen: v5e
topology: v5e:2x2
jax: 0.10.0
libtpu: 0.0.40
codegen_flags: <defaults>
</compile_context>

<pallas_src>
import math
import functools

import jax
import jax.numpy as jnp
from jax import lax
from jax.experimental import pallas as pl
from jax.experimental.pallas import tpu as pltpu


# ----------------------------- config ---------------------------------------
VOCAB = 64
N_EMBD = 32
N_HEAD = 4
N_LAYERS = 2
BLOCK_SIZE = 16
LN_EPS = 1e-5
VOCAB_PAD = 128   # lane-dense logits stores (>=128 lanes); sliced back to VOCAB in the wrapper


def _gelu(x):
    # tanh-approximate GELU; TODO(synk): switch to exact erf GELU if the reference block uses nn.GELU(approximate='none')
    c = math.sqrt(2.0 / math.pi)
    return 0.5 * x * (1.0 + jnp.tanh(c * (x + 0.044715 * x * x * x)))


def _layernorm(x, w, b):
    mu = jnp.mean(x, axis=-1, keepdims=True)
    var = jnp.mean((x - mu) * (x - mu), axis=-1, keepdims=True)
    return (x - mu) * lax.rsqrt(var + LN_EPS) * w + b


# --------------------------- fused forward kernel ----------------------------
def fused_forward_kernel(x_ref,
                         ln1w_ref, ln1b_ref, wqkv_ref, bqkv_ref, wo_ref, bo_ref,
                         ln2w_ref, ln2b_ref, wfc_ref, bfc_ref, wpr_ref, bpr_ref,
                         lnfw_ref, lnfb_ref, wlm_ref,
                         out_ref,
                         *, n_layers, n_head, batch, seq, last_only):
    x = x_ref[...].astype(jnp.float32)                       # (B*T, D)
    BT, D = x.shape
    B, T = batch, seq
    hd = D // n_head
    scale = 1.0 / math.sqrt(hd)

    # Causal mask built once and hoisted out of the layer/head loops
    # (JAX does not CSE broadcast_in_dim).
    row = lax.broadcasted_iota(jnp.int32, (1, T, T), 1)
    col = lax.broadcasted_iota(jnp.int32, (1, T, T), 2)
    causal = col <= row                                      # (1, T, T)

    for li in range(n_layers):                               # static unroll (L = 2)
        # ---- attention sub-block: x = x + Wo(attn(LN1(x))) + bo ----
        xn = _layernorm(x, ln1w_ref[li], ln1b_ref[li])
        qkv = jnp.dot(xn, wqkv_ref[li],
                      preferred_element_type=jnp.float32) + bqkv_ref[li]        # (BT, 3D)
        q = (qkv[:, :D] * scale).reshape(B, T, D)            # fold 1/sqrt(hd) into q once
        k = qkv[:, D:2 * D].reshape(B, T, D)
        v = qkv[:, 2 * D:].reshape(B, T, D)

        wo_l = wo_ref[li]                                    # (D, D)
        acc = jnp.zeros((BT, D), jnp.float32)
        for h in range(n_head):                              # static unroll (H = 4)
            lo = h * hd
            qh = q[:, :, lo:lo + hd]                         # (B, T, hd)
            kh = k[:, :, lo:lo + hd]
            vh = v[:, :, lo:lo + hd]
            # batched contraction on last dims (no explicit transpose)
            s = jnp.einsum('bqd,bkd->bqk', qh, kh,
                           preferred_element_type=jnp.float32)                  # (B, T, T)
            s = jnp.where(causal, s, -1e30)
            s = s - jnp.max(s, axis=-1, keepdims=True)
            p = jnp.exp(s)
            p = p * pl.reciprocal(jnp.sum(p, axis=-1, keepdims=True), approx=True)
            oh = jnp.einsum('bqk,bkd->bqd', p, vh,
                            preferred_element_type=jnp.float32)                 # (B, T, hd)
            # accumulate head output directly into the output projection
            # (avoids a lane-dim concat of the heads)
            acc = acc + jnp.dot(oh.reshape(BT, hd), wo_l[lo:lo + hd, :],
                                preferred_element_type=jnp.float32)
        x = x + acc + bo_ref[li]

        # ---- MLP sub-block: x = x + proj(gelu(fc(LN2(x)))) ----
        xn2 = _layernorm(x, ln2w_ref[li], ln2b_ref[li])
        h1 = _gelu(jnp.dot(xn2, wfc_ref[li],
                           preferred_element_type=jnp.float32) + bfc_ref[li])
        x = x + jnp.dot(h1, wpr_ref[li],
                        preferred_element_type=jnp.float32) + bpr_ref[li]

    # ---- final layernorm + lm_head (VOCAB padded to 128 lanes) ----
    xf = _layernorm(x, lnfw_ref[...], lnfb_ref[...])
    if last_only:
        xl = xf.reshape(B, T, D)[:, T - 1, :]                # (B, D): only last position
        logits = jnp.dot(xl, wlm_ref[...], preferred_element_type=jnp.float32)
    else:
        logits = jnp.dot(xf, wlm_ref[...], preferred_element_type=jnp.float32)
    out_ref[...] = logits.astype(out_ref.dtype)


# ------------------------------ wrapper ---------------------------------------
_LAYER_KEYS = ("ln1w", "ln1b", "wqkv", "bqkv", "wo", "bo",
               "ln2w", "ln2b", "wfc", "bfc", "wpr", "bpr")


def _vmem_spec():
    return pl.BlockSpec(memory_space=pltpu.MemorySpace.VMEM)


def run_transformer(x2d, params, *, batch, seq, last_only):
    """One fused pallas_call: all layers + final LN + lm_head, weights resident in VMEM."""
    ordered = [params[k] for k in _LAYER_KEYS] + [params["lnfw"], params["lnfb"], params["wlm_p"]]
    out_rows = batch if last_only else batch * seq
    kernel = functools.partial(
        fused_forward_kernel,
        n_layers=N_LAYERS, n_head=N_HEAD, batch=batch, seq=seq, last_only=last_only)
    # Single block, no grid: the whole problem (<1 MiB of weights + activations) lives in VMEM
    # for the entire forward.  TODO(synk): if batch grows, add a leading "parallel" batch grid
    # axis so v7x's second TensorCore shares the work; at B=2 a single fused block is faster.
    return pl.pallas_call(
        kernel,
        out_shape=jax.ShapeDtypeStruct((out_rows, VOCAB_PAD), jnp.float32),
        in_specs=[_vmem_spec() for _ in range(1 + len(ordered))],
        out_specs=_vmem_spec(),
    )(x2d, *ordered)


# ------------------------------ parameter init --------------------------------
def init_params(key):
    """Deterministic init mirroring Transformer._init_weights (std=0.02, zero biases,
    special std for mlp.projection.weight)."""
    std = 0.02
    proj_std = 0.02 / math.sqrt(2 * N_LAYERS)
    D, V, H4, L = N_EMBD, VOCAB, 4 * N_EMBD, N_LAYERS
    keys = jax.random.split(key, 2 + L)

    params = {}
    params["embed"] = std * jax.random.normal(keys[0], (V, D), jnp.float32)
    # lm_head: PyTorch weight (V, D), no bias -> stored transposed (D, V), lane-padded to 128
    wlm = std * jax.random.normal(keys[1], (V, D), jnp.float32).T             # (D, V)
    params["wlm_p"] = jnp.pad(wlm, ((0, 0), (0, VOCAB_PAD - V)))
    params["lnfw"] = jnp.ones((1, D), jnp.float32)
    params["lnfb"] = jnp.zeros((1, D), jnp.float32)

    per_layer = {k: [] for k in _LAYER_KEYS}
    for li in range(L):
        ks = jax.random.split(keys[2 + li], 6)
        wq = std * jax.random.normal(ks[0], (D, D), jnp.float32).T
        wk = std * jax.random.normal(ks[1], (D, D), jnp.float32).T
        wv = std * jax.random.normal(ks[2], (D, D), jnp.float32).T
        per_layer["ln1w"].append(jnp.ones((1, D), jnp.float32))
        per_layer["ln1b"].append(jnp.zeros((1, D), jnp.float32))
        per_layer["wqkv"].append(jnp.concatenate([wq, wk, wv], axis=1))       # (D, 3D) fused QKV
        per_layer["bqkv"].append(jnp.zeros((1, 3 * D), jnp.float32))
        per_layer["wo"].append(std * jax.random.normal(ks[3], (D, D), jnp.float32).T)
        per_layer["bo"].append(jnp.zeros((1, D), jnp.float32))
        per_layer["ln2w"].append(jnp.ones((1, D), jnp.float32))
        per_layer["ln2b"].append(jnp.zeros((1, D), jnp.float32))
        per_layer["wfc"].append(std * jax.random.normal(ks[4], (H4, D), jnp.float32).T)
        per_layer["bfc"].append(jnp.zeros((1, H4), jnp.float32))
        # mlp.projection.weight gets special std per the reference module
        per_layer["wpr"].append(proj_std * jax.random.normal(ks[5], (D, H4), jnp.float32).T)
        per_layer["bpr"].append(jnp.zeros((1, D), jnp.float32))
    for k in _LAYER_KEYS:
        params[k] = jnp.stack(per_layer[k], axis=0)          # stacked over layers (L, ...)
    return params


# ------------------------------ forward ---------------------------------------
def transformer_forward(params, idx, targets=None):
    B, T = idx.shape
    D, V = N_EMBD, VOCAB
    # embedding gather + (pos_encoding == 0): plain-JAX glue outside the kernel
    x = jnp.take(params["embed"], idx, axis=0).reshape(B * T, D)

    if targets is not None:
        logits = run_transformer(x, params, batch=B, seq=T, last_only=False)  # (B*T, 128)
        logits = logits[:, :V].reshape(B, T, V)
        # cross-entropy with ignore_index=-1 (glue, not the hot path)
        logp = jax.nn.log_softmax(logits, axis=-1)
        safe_t = jnp.maximum(targets, 0)
        nll = -jnp.take_along_axis(logp, safe_t[..., None], axis=-1)[..., 0]
        mask = (targets != -1).astype(jnp.float32)
        loss = jnp.sum(nll * mask) / jnp.maximum(jnp.sum(mask), 1.0)
        return logits, loss

    # targets is None -> only last-position logits, computed inside the kernel
    logits = run_transformer(x, params, batch=B, seq=T, last_only=True)       # (B, 128)
    return logits[:, :V].reshape(B, 1, V), None


# -------------------------------- main -----------------------------------------
if __name__ == "__main__":
    key = jax.random.PRNGKey(0)
    pkey, ikey = jax.random.split(key)
    params = init_params(pkey)

    B, T = 2, 8
    idx = jax.random.randint(ikey, (B, T), 0, VOCAB, dtype=jnp.int32)

    # inference path (last-position logits only)
    logits, _ = transformer_forward(params, idx, targets=None)
    logits = jax.block_until_ready(logits)
    assert logits.shape == (B, 1, VOCAB)
    assert bool(jnp.all(jnp.isfinite(logits)))

    # training path (full-sequence logits + masked cross-entropy)
    full_logits, loss = transformer_forward(params, idx, targets=idx)
    jax.block_until_ready((full_logits, loss))
    assert full_logits.shape == (B, T, VOCAB)
    assert bool(jnp.isfinite(loss))

    print("KERNEL_OK")
</pallas_src>

<mosaic_0001>
module attributes {stable_mosaic.version = 11 : i64} {
  func.func @fused_forward_kernel(%arg0: memref<16x32xf32, #tpu.memory_space<vmem>>, %arg1: memref<2x1x32xf32, #tpu.memory_space<vmem>>, %arg2: memref<2x1x32xf32, #tpu.memory_space<vmem>>, %arg3: memref<2x32x96xf32, #tpu.memory_space<vmem>>, %arg4: memref<2x1x96xf32, #tpu.memory_space<vmem>>, %arg5: memref<2x32x32xf32, #tpu.memory_space<vmem>>, %arg6: memref<2x1x32xf32, #tpu.memory_space<vmem>>, %arg7: memref<2x1x32xf32, #tpu.memory_space<vmem>>, %arg8: memref<2x1x32xf32, #tpu.memory_space<vmem>>, %arg9: memref<2x32x128xf32, #tpu.memory_space<vmem>>, %arg10: memref<2x1x128xf32, #tpu.memory_space<vmem>>, %arg11: memref<2x128x32xf32, #tpu.memory_space<vmem>>, %arg12: memref<2x1x32xf32, #tpu.memory_space<vmem>>, %arg13: memref<1x32xf32, #tpu.memory_space<vmem>>, %arg14: memref<1x32xf32, #tpu.memory_space<vmem>>, %arg15: memref<32x128xf32, #tpu.memory_space<vmem>>, %arg16: memref<2x128xf32, #tpu.memory_space<vmem>>) attributes {dimension_semantics = [], scalar_prefetch = 0 : i64, scratch_operands = 0 : i64, tpu.core_type = #tpu.core_type<tc>} {
    %c0 = arith.constant 0 : index
    %c0_0 = arith.constant 0 : index
    %0 = vector.load %arg0[%c0, %c0_0] : memref<16x32xf32, #tpu.memory_space<vmem>>, vector<16x32xf32>
    %1 = tpu.iota {dimensions = array<i32: 1>} : vector<1x8x8xi32>
    %2 = tpu.iota {dimensions = array<i32: 2>} : vector<1x8x8xi32>
    %3 = arith.cmpi sle, %2, %1 : vector<1x8x8xi32>
    %c0_1 = arith.constant 0 : index
    %c0_2 = arith.constant 0 : index
    %c0_3 = arith.constant 0 : index
    %4 = vector.load %arg1[%c0_1, %c0_2, %c0_3] : memref<2x1x32xf32, #tpu.memory_space<vmem>>, vector<1x1x32xf32>
    %5 = vector.shape_cast %4 : vector<1x1x32xf32> to vector<1x32xf32>
    %c0_4 = arith.constant 0 : index
    %c0_5 = arith.constant 0 : index
    %c0_6 = arith.constant 0 : index
    %6 = vector.load %arg2[%c0_4, %c0_5, %c0_6] : memref<2x1x32xf32, #tpu.memory_space<vmem>>, vector<1x1x32xf32>
    %7 = vector.shape_cast %6 : vector<1x1x32xf32> to vector<1x32xf32>
    %cst = arith.constant dense<0.000000e+00> : vector<16xf32>
    %8 = vector.multi_reduction <add>, %0, %cst [1] : vector<16x32xf32> to vector<16xf32>
    %9 = vector.shape_cast %8 : vector<16xf32> to vector<16x1xf32>
    %cst_7 = arith.constant 3.200000e+01 : f32
    %10 = vector.broadcast %cst_7 : f32 to vector<16x1xf32>
    %11 = arith.divf %9, %10 : vector<16x1xf32>
    %12 = vector.broadcast %11 : vector<16x1xf32> to vector<16x32xf32>
    %13 = arith.subf %0, %12 : vector<16x32xf32>
    %14 = vector.broadcast %11 : vector<16x1xf32> to vector<16x32xf32>
    %15 = arith.subf %0, %14 : vector<16x32xf32>
    %16 = arith.mulf %13, %15 : vector<16x32xf32>
    %cst_8 = arith.constant dense<0.000000e+00> : vector<16xf32>
    %17 = vector.multi_reduction <add>, %16, %cst_8 [1] : vector<16x32xf32> to vector<16xf32>
    %18 = vector.shape_cast %17 : vector<16xf32> to vector<16x1xf32>
    %cst_9 = arith.constant 3.200000e+01 : f32
    %19 = vector.broadcast %cst_9 : f32 to vector<16x1xf32>
    %20 = arith.divf %18, %19 : vector<16x1xf32>
    %21 = vector.broadcast %11 : vector<16x1xf32> to vector<16x32xf32>
    %22 = arith.subf %0, %21 : vector<16x32xf32>
    %cst_10 = arith.constant 9.99999974E-6 : f32
    %23 = vector.broadcast %cst_10 : f32 to vector<16x1xf32>
    %24 = arith.addf %20, %23 : vector<16x1xf32>
    %25 = math.rsqrt %24 : vector<16x1xf32>
    %26 = vector.broadcast %25 : vector<16x1xf32> to vector<16x32xf32>
    %27 = arith.mulf %22, %26 : vector<16x32xf32>
    %28 = vector.broadcast %5 : vector<1x32xf32> to vector<16x32xf32>
    %29 = arith.mulf %27, %28 : vector<16x32xf32>
    %30 = vector.broadcast %7 : vector<1x32xf32> to vector<16x32xf32>
    %31 = arith.addf %29, %30 : vector<16x32xf32>
    %c0_11 = arith.constant 0 : index
    %c0_12 = arith.constant 0 : index
    %c0_13 = arith.constant 0 : index
    %32 = vector.load %arg3[%c0_11, %c0_12, %c0_13] : memref<2x32x96xf32, #tpu.memory_space<vmem>>, vector<1x32x96xf32>
    %33 = vector.shape_cast %32 : vector<1x32x96xf32> to vector<32x96xf32>
    %cst_14 = arith.constant dense<0.000000e+00> : vector<16x96xf32>
    %34 = tpu.matmul %31, %33, %cst_14 {dimension_numbers = #tpu.dot_dimension_numbers<[1], [0], [0], [1], [0, 0, 1, 1], [], []>} : vector<16x32xf32>, vector<32x96xf32>, vector<16x96xf32> -> vector<16x96xf32>
    %c0_15 = arith.constant 0 : index
    %c0_16 = arith.constant 0 : index
    %c0_17 = arith.constant 0 : index
    %35 = vector.load %arg4[%c0_15, %c0_16, %c0_17] : memref<2x1x96xf32, #tpu.memory_space<vmem>>, vector<1x1x96xf32>
    %36 = vector.shape_cast %35 : vector<1x1x96xf32> to vector<1x96xf32>
    %37 = vector.broadcast %36 : vector<1x96xf32> to vector<16x96xf32>
    %38 = arith.addf %34, %37 : vector<16x96xf32>
    %39 = vector.extract_strided_slice %38 {offsets = [0, 0], sizes = [16, 32], strides = [1, 1]} : vector<16x96xf32> to vector<16x32xf32>
    %cst_18 = arith.constant 0.353553385 : f32
    %40 = vector.broadcast %cst_18 : f32 to vector<16x32xf32>
    %41 = arith.mulf %39, %40 : vector<16x32xf32>
    %42 = vector.shape_cast %41 : vector<16x32xf32> to vector<2x8x32xf32>
    %43 = vector.extract_strided_slice %38 {offsets = [0, 32], sizes = [16, 32], strides = [1, 1]} : vector<16x96xf32> to vector<16x32xf32>
    %44 = vector.shape_cast %43 : vector<16x32xf32> to vector<2x8x32xf32>
    %45 = vector.extract_strided_slice %38 {offsets = [0, 64], sizes = [16, 32], strides = [1, 1]} : vector<16x96xf32> to vector<16x32xf32>
    %46 = vector.shape_cast %45 : vector<16x32xf32> to vector<2x8x32xf32>
    %c0_19 = arith.constant 0 : index
    %c0_20 = arith.constant 0 : index
    %c0_21 = arith.constant 0 : index
    %47 = vector.load %arg5[%c0_19, %c0_20, %c0_21] : memref<2x32x32xf32, #tpu.memory_space<vmem>>, vector<1x32x32xf32>
    %48 = vector.shape_cast %47 : vector<1x32x32xf32> to vector<32x32xf32>
    %cst_22 = arith.constant 0.000000e+00 : f32
    %49 = vector.broadcast %cst_22 : f32 to vector<16x32xf32>
    %50 = vector.extract_strided_slice %42 {offsets = [0, 0, 0], sizes = [2, 8, 8], strides = [1, 1, 1]} : vector<2x8x32xf32> to vector<2x8x8xf32>
    %51 = vector.extract_strided_slice %44 {offsets = [0, 0, 0], sizes = [2, 8, 8], strides = [1, 1, 1]} : vector<2x8x32xf32> to vector<2x8x8xf32>
    %52 = vector.extract_strided_slice %46 {offsets = [0, 0, 0], sizes = [2, 8, 8], strides = [1, 1, 1]} : vector<2x8x32xf32> to vector<2x8x8xf32>
    "tpu.trace_start"() <{level = 10 : i32, message = "bqd,bkd->bqk"}> : () -> ()
    %cst_23 = arith.constant dense<0.000000e+00> : vector<2x8x8xf32>
    %53 = tpu.matmul %50, %51, %cst_23 {dimension_numbers = #tpu.dot_dimension_numbers<[2], [2], [1], [1], [0, 0, 0, 1, 1, 1], [0], [0]>} : vector<2x8x8xf32>, vector<2x8x8xf32>, vector<2x8x8xf32> -> vector<2x8x8xf32>
    %cst_24 = arith.constant -1.000000e+30 : f32
    "tpu.trace_stop"() : () -> ()
    %54 = vector.shape_cast %3 : vector<1x8x8xi1> to vector<1x8x8xi1>
    %55 = vector.broadcast %54 : vector<1x8x8xi1> to vector<2x8x8xi1>
    %56 = vector.broadcast %cst_24 : f32 to vector<2x8x8xf32>
    %57 = arith.select %55, %53, %56 : vector<2x8x8xi1>, vector<2x8x8xf32>
    %cst_25 = arith.constant dense<0xFF800000> : vector<2x8xf32>
    %58 = vector.multi_reduction <maximumf>, %57, %cst_25 [2] : vector<2x8x8xf32> to vector<2x8xf32>
    %59 = vector.shape_cast %58 : vector<2x8xf32> to vector<2x8x1xf32>
    %60 = vector.broadcast %59 : vector<2x8x1xf32> to vector<2x8x8xf32>
    %61 = arith.subf %57, %60 : vector<2x8x8xf32>
    %62 = math.exp %61 : vector<2x8x8xf32>
    %cst_26 = arith.constant dense<0.000000e+00> : vector<2x8xf32>
    %63 = vector.multi_reduction <add>, %62, %cst_26 [2] : vector<2x8x8xf32> to vector<2x8xf32>
    %64 = vector.shape_cast %63 : vector<2x8xf32> to vector<2x8x1xf32>
    %65 = tpu.reciprocal %64 {approx = true} : vector<2x8x1xf32> -> vector<2x8x1xf32>
    %66 = vector.broadcast %65 : vector<2x8x1xf32> to vector<2x8x8xf32>
    %67 = arith.mulf %62, %66 : vector<2x8x8xf32>
    "tpu.trace_start"() <{level = 10 : i32, message = "bqk,bkd->bqd"}> : () -> ()
    %cst_27 = arith.constant dense<0.000000e+00> : vector<2x8x8xf32>
    %68 = tpu.matmul %67, %52, %cst_27 {dimension_numbers = #tpu.dot_dimension_numbers<[2], [1], [1], [2], [0, 0, 0, 1, 1, 2], [0], [0]>} : vector<2x8x8xf32>, vector<2x8x8xf32>, vector<2x8x8xf32> -> vector<2x8x8xf32>
    "tpu.trace_stop"() : () -> ()
    %69 = vector.shape_cast %68 : vector<2x8x8xf32> to vector<16x8xf32>
    %70 = vector.extract_strided_slice %48 {offsets = [0, 0], sizes = [8, 32], strides = [1, 1]} : vector<32x32xf32> to vector<8x32xf32>
    %cst_28 = arith.constant dense<0.000000e+00> : vector<16x32xf32>
    %71 = tpu.matmul %69, %70, %cst_28 {dimension_numbers = #tpu.dot_dimension_numbers<[1], [0], [0], [1], [0, 0, 1, 1], [], []>} : vector<16x8xf32>, vector<8x32xf32>, vector<16x32xf32> -> vector<16x32xf32>
    %72 = arith.addf %49, %71 : vector<16x32xf32>
    %73 = vector.extract_strided_slice %42 {offsets = [0, 0, 8], sizes = [2, 8, 8], strides = [1, 1, 1]} : vector<2x8x32xf32> to vector<2x8x8xf32>
    %74 = vector.extract_strided_slice %44 {offsets = [0, 0, 8], sizes = [2, 8, 8], strides = [1, 1, 1]} : vector<2x8x32xf32> to vector<2x8x8xf32>
    %75 = vector.extract_strided_slice %46 {offsets = [0, 0, 8], sizes = [2, 8, 8], strides = [1, 1, 1]} : vector<2x8x32xf32> to vector<2x8x8xf32>
    "tpu.trace_start"() <{level = 10 : i32, message = "bqd,bkd->bqk"}> : () -> ()
    %cst_29 = arith.constant dense<0.000000e+00> : vector<2x8x8xf32>
    %76 = tpu.matmul %73, %74, %cst_29 {dimension_numbers = #tpu.dot_dimension_numbers<[2], [2], [1], [1], [0, 0, 0, 1, 1, 1], [0], [0]>} : vector<2x8x8xf32>, vector<2x8x8xf32>, vector<2x8x8xf32> -> vector<2x8x8xf32>
    %cst_30 = arith.constant -1.000000e+30 : f32
    "tpu.trace_stop"() : () -> ()
    %77 = vector.shape_cast %3 : vector<1x8x8xi1> to vector<1x8x8xi1>
    %78 = vector.broadcast %77 : vector<1x8x8xi1> to vector<2x8x8xi1>
    %79 = vector.broadcast %cst_30 : f32 to vector<2x8x8xf32>
    %80 = arith.select %78, %76, %79 : vector<2x8x8xi1>, vector<2x8x8xf32>
    %cst_31 = arith.constant dense<0xFF800000> : vector<2x8xf32>
    %81 = vector.multi_reduction <maximumf>, %80, %cst_31 [2] : vector<2x8x8xf32> to vector<2x8xf32>
    %82 = vector.shape_cast %81 : vector<2x8xf32> to vector<2x8x1xf32>
    %83 = vector.broadcast %82 : vector<2x8x1xf32> to vector<2x8x8xf32>
    %84 = arith.subf %80, %83 : vector<2x8x8xf32>
    %85 = math.exp %84 : vector<2x8x8xf32>
    %cst_32 = arith.constant dense<0.000000e+00> : vector<2x8xf32>
    %86 = vector.multi_reduction <add>, %85, %cst_32 [2] : vector<2x8x8xf32> to vector<2x8xf32>
    %87 = vector.shape_cast %86 : vector<2x8xf32> to vector<2x8x1xf32>
    %88 = tpu.reciprocal %87 {approx = true} : vector<2x8x1xf32> -> vector<2x8x1xf32>
    %89 = vector.broadcast %88 : vector<2x8x1xf32> to vector<2x8x8xf32>
    %90 = arith.mulf %85, %89 : vector<2x8x8xf32>
    "tpu.trace_start"() <{level = 10 : i32, message = "bqk,bkd->bqd"}> : () -> ()
    %cst_33 = arith.constant dense<0.000000e+00> : vector<2x8x8xf32>
    %91 = tpu.matmul %90, %75, %cst_33 {dimension_numbers = #tpu.dot_dimension_numbers<[2], [1], [1], [2], [0, 0, 0, 1, 1, 2], [0], [0]>} : vector<2x8x8xf32>, vector<2x8x8xf32>, vector<2x8x8xf32> -> vector<2x8x8xf32>
    "tpu.trace_stop"() : () -> ()
    %92 = vector.shape_cast %91 : vector<2x8x8xf32> to vector<16x8xf32>
    %93 = vector.extract_strided_slice %48 {offsets = [8, 0], sizes = [8, 32], strides = [1, 1]} : vector<32x32xf32> to vector<8x32xf32>
    %cst_34 = arith.constant dense<0.000000e+00> : vector<16x32xf32>
    %94 = tpu.matmul %92, %93, %cst_34 {dimension_numbers = #tpu.dot_dimension_numbers<[1], [0], [0], [1], [0, 0, 1, 1], [], []>} : vector<16x8xf32>, vector<8x32xf32>, vector<16x32xf32> -> vector<16x32xf32>
    %95 = arith.addf %72, %94 : vector<16x32xf32>
    %96 = vector.extract_strided_slice %42 {offsets = [0, 0, 16], sizes = [2, 8, 8], strides = [1, 1, 1]} : vector<2x8x32xf32> to vector<2x8x8xf32>
    %97 = vector.extract_strided_slice %44 {offsets = [0, 0, 16], sizes = [2, 8, 8], strides = [1, 1, 1]} : vector<2x8x32xf32> to vector<2x8x8xf32>
    %98 = vector.extract_strided_slice %46 {offsets = [0, 0, 16], sizes = [2, 8, 8], strides = [1, 1, 1]} : vector<2x8x32xf32> to vector<2x8x8xf32>
    "tpu.trace_start"() <{level = 10 : i32, message = "bqd,bkd->bqk"}> : () -> ()
    %cst_35 = arith.constant dense<0.000000e+00> : vector<2x8x8xf32>
    %99 = tpu.matmul %96, %97, %cst_35 {dimension_numbers = #tpu.dot_dimension_numbers<[2], [2], [1], [1], [0, 0, 0, 1, 1, 1], [0], [0]>} : vector<2x8x8xf32>, vector<2x8x8xf32>, vector<2x8x8xf32> -> vector<2x8x8xf32>
    %cst_36 = arith.constant -1.000000e+30 : f32
    "tpu.trace_stop"() : () -> ()
    %100 = vector.shape_cast %3 : vector<1x8x8xi1> to vector<1x8x8xi1>
    %101 = vector.broadcast %100 : vector<1x8x8xi1> to vector<2x8x8xi1>
    %102 = vector.broadcast %cst_36 : f32 to vector<2x8x8xf32>
    %103 = arith.select %101, %99, %102 : vector<2x8x8xi1>, vector<2x8x8xf32>
    %cst_37 = arith.constant dense<0xFF800000> : vector<2x8xf32>
    %104 = vector.multi_reduction <maximumf>, %103, %cst_37 [2] : vector<2x8x8xf32> to vector<2x8xf32>
    %105 = vector.shape_cast %104 : vector<2x8xf32> to vector<2x8x1xf32>
    %106 = vector.broadcast %105 : vector<2x8x1xf32> to vector<2x8x8xf32>
    %107 = arith.subf %103, %106 : vector<2x8x8xf32>
    %108 = math.exp %107 : vector<2x8x8xf32>
    %cst_38 = arith.constant dense<0.000000e+00> : vector<2x8xf32>
    %109 = vector.multi_reduction <add>, %108, %cst_38 [2] : vector<2x8x8xf32> to vector<2x8xf32>
    %110 = vector.shape_cast %109 : vector<2x8xf32> to vector<2x8x1xf32>
    %111 = tpu.reciprocal %110 {approx = true} : vector<2x8x1xf32> -> vector<2x8x1xf32>
    %112 = vector.broadcast %111 : vector<2x8x1xf32> to vector<2x8x8xf32>
    %113 = arith.mulf %108, %112 : vector<2x8x8xf32>
    "tpu.trace_start"() <{level = 10 : i32, message = "bqk,bkd->bqd"}> : () -> ()
    %cst_39 = arith.constant dense<0.000000e+00> : vector<2x8x8xf32>
    %114 = tpu.matmul %113, %98, %cst_39 {dimension_numbers = #tpu.dot_dimension_numbers<[2], [1], [1], [2], [0, 0, 0, 1, 1, 2], [0], [0]>} : vector<2x8x8xf32>, vector<2x8x8xf32>, vector<2x8x8xf32> -> vector<2x8x8xf32>
    "tpu.trace_stop"() : () -> ()
    %115 = vector.shape_cast %114 : vector<2x8x8xf32> to vector<16x8xf32>
    %116 = vector.extract_strided_slice %48 {offsets = [16, 0], sizes = [8, 32], strides = [1, 1]} : vector<32x32xf32> to vector<8x32xf32>
    %cst_40 = arith.constant dense<0.000000e+00> : vector<16x32xf32>
    %117 = tpu.matmul %115, %116, %cst_40 {dimension_numbers = #tpu.dot_dimension_numbers<[1], [0], [0], [1], [0, 0, 1, 1], [], []>} : vector<16x8xf32>, vector<8x32xf32>, vector<16x32xf32> -> vector<16x32xf32>
    %118 = arith.addf %95, %117 : vector<16x32xf32>
    %119 = vector.extract_strided_slice %42 {offsets = [0, 0, 24], sizes = [2, 8, 8], strides = [1, 1, 1]} : vector<2x8x32xf32> to vector<2x8x8xf32>
    %120 = vector.extract_strided_slice %44 {offsets = [0, 0, 24], sizes = [2, 8, 8], strides = [1, 1, 1]} : vector<2x8x32xf32> to vector<2x8x8xf32>
    %121 = vector.extract_strided_slice %46 {offsets = [0, 0, 24], sizes = [2, 8, 8], strides = [1, 1, 1]} : vector<2x8x32xf32> to vector<2x8x8xf32>
    "tpu.trace_start"() <{level = 10 : i32, message = "bqd,bkd->bqk"}> : () -> ()
    %cst_41 = arith.constant dense<0.000000e+00> : vector<2x8x8xf32>
    %122 = tpu.matmul %119, %120, %cst_41 {dimension_numbers = #tpu.dot_dimension_numbers<[2], [2], [1], [1], [0, 0, 0, 1, 1, 1], [0], [0]>} : vector<2x8x8xf32>, vector<2x8x8xf32>, vector<2x8x8xf32> -> vector<2x8x8xf32>
    %cst_42 = arith.constant -1.000000e+30 : f32
    "tpu.trace_stop"() : () -> ()
    %123 = vector.shape_cast %3 : vector<1x8x8xi1> to vector<1x8x8xi1>
    %124 = vector.broadcast %123 : vector<1x8x8xi1> to vector<2x8x8xi1>
    %125 = vector.broadcast %cst_42 : f32 to vector<2x8x8xf32>
    %126 = arith.select %124, %122, %125 : vector<2x8x8xi1>, vector<2x8x8xf32>
    %cst_43 = arith.constant dense<0xFF800000> : vector<2x8xf32>
    %127 = vector.multi_reduction <maximumf>, %126, %cst_43 [2] : vector<2x8x8xf32> to vector<2x8xf32>
    %128 = vector.shape_cast %127 : vector<2x8xf32> to vector<2x8x1xf32>
    %129 = vector.broadcast %128 : vector<2x8x1xf32> to vector<2x8x8xf32>
    %130 = arith.subf %126, %129 : vector<2x8x8xf32>
    %131 = math.exp %130 : vector<2x8x8xf32>
    %cst_44 = arith.constant dense<0.000000e+00> : vector<2x8xf32>
    %132 = vector.multi_reduction <add>, %131, %cst_44 [2] : vector<2x8x8xf32> to vector<2x8xf32>
    %133 = vector.shape_cast %132 : vector<2x8xf32> to vector<2x8x1xf32>
    %134 = tpu.reciprocal %133 {approx = true} : vector<2x8x1xf32> -> vector<2x8x1xf32>
    %135 = vector.broadcast %134 : vector<2x8x1xf32> to vector<2x8x8xf32>
    %136 = arith.mulf %131, %135 : vector<2x8x8xf32>
    "tpu.trace_start"() <{level = 10 : i32, message = "bqk,bkd->bqd"}> : () -> ()
    %cst_45 = arith.constant dense<0.000000e+00> : vector<2x8x8xf32>
    %137 = tpu.matmul %136, %121, %cst_45 {dimension_numbers = #tpu.dot_dimension_numbers<[2], [1], [1], [2], [0, 0, 0, 1, 1, 2], [0], [0]>} : vector<2x8x8xf32>, vector<2x8x8xf32>, vector<2x8x8xf32> -> vector<2x8x8xf32>
    "tpu.trace_stop"() : () -> ()
    %138 = vector.shape_cast %137 : vector<2x8x8xf32> to vector<16x8xf32>
    %139 = vector.extract_strided_slice %48 {offsets = [24, 0], sizes = [8, 32], strides = [1, 1]} : vector<32x32xf32> to vector<8x32xf32>
    %cst_46 = arith.constant dense<0.000000e+00> : vector<16x32xf32>
    %140 = tpu.matmul %138, %139, %cst_46 {dimension_numbers = #tpu.dot_dimension_numbers<[1], [0], [0], [1], [0, 0, 1, 1], [], []>} : vector<16x8xf32>, vector<8x32xf32>, vector<16x32xf32> -> vector<16x32xf32>
    %141 = arith.addf %118, %140 : vector<16x32xf32>
    %142 = arith.addf %0, %141 : vector<16x32xf32>
    %c0_47 = arith.constant 0 : index
    %c0_48 = arith.constant 0 : index
    %c0_49 = arith.constant 0 : index
    %143 = vector.load %arg6[%c0_47, %c0_48, %c0_49] : memref<2x1x32xf32, #tpu.memory_space<vmem>>, vector<1x1x32xf32>
    %144 = vector.shape_cast %143 : vector<1x1x32xf32> to vector<1x32xf32>
    %145 = vector.broadcast %144 : vector<1x32xf32> to vector<16x32xf32>
    %146 = arith.addf %142, %145 : vector<16x32xf32>
    %c0_50 = arith.constant 0 : index
    %c0_51 = arith.constant 0 : index
    %c0_52 = arith.constant 0 : index
    %147 = vector.load %arg7[%c0_50, %c0_51, %c0_52] : memref<2x1x32xf32, #tpu.memory_space<vmem>>, vector<1x1x32xf32>
    %148 = vector.shape_cast %147 : vector<1x1x32xf32> to vector<1x32xf32>
    %c0_53 = arith.constant 0 : index
    %c0_54 = arith.constant 0 : index
    %c0_55 = arith.constant 0 : index
    %149 = vector.load %arg8[%c0_53, %c0_54, %c0_55] : memref<2x1x32xf32, #tpu.memory_space<vmem>>, vector<1x1x32xf32>
    %150 = vector.shape_cast %149 : vector<1x1x32xf32> to vector<1x32xf32>
    %cst_56 = arith.constant dense<0.000000e+00> : vector<16xf32>
    %151 = vector.multi_reduction <add>, %146, %cst_56 [1] : vector<16x32xf32> to vector<16xf32>
    %152 = vector.shape_cast %151 : vector<16xf32> to vector<16x1xf32>
    %cst_57 = arith.constant 3.200000e+01 : f32
    %153 = vector.broadcast %cst_57 : f32 to vector<16x1xf32>
    %154 = arith.divf %152, %153 : vector<16x1xf32>
    %155 = vector.broadcast %154 : vector<16x1xf32> to vector<16x32xf32>
    %156 = arith.subf %146, %155 : vector<16x32xf32>
    %157 = vector.broadcast %154 : vector<16x1xf32> to vector<16x32xf32>
    %158 = arith.subf %146, %157 : vector<16x32xf32>
    %159 = arith.mulf %156, %158 : vector<16x32xf32>
    %cst_58 = arith.constant dense<0.000000e+00> : vector<16xf32>
    %160 = vector.multi_reduction <add>, %159, %cst_58 [1] : vector<16x32xf32> to vector<16xf32>
    %161 = vector.shape_cast %160 : vector<16xf32> to vector<16x1xf32>
    %cst_59 = arith.constant 3.200000e+01 : f32
    %162 = vector.broadcast %cst_59 : f32 to vector<16x1xf32>
    %163 = arith.divf %161, %162 : vector<16x1xf32>
    %164 = vector.broadcast %154 : vector<16x1xf32> to vector<16x32xf32>
    %165 = arith.subf %146, %164 : vector<16x32xf32>
    %cst_60 = arith.constant 9.99999974E-6 : f32
    %166 = vector.broadcast %cst_60 : f32 to vector<16x1xf32>
    %167 = arith.addf %163, %166 : vector<16x1xf32>
    %168 = math.rsqrt %167 : vector<16x1xf32>
    %169 = vector.broadcast %168 : vector<16x1xf32> to vector<16x32xf32>
    %170 = arith.mulf %165, %169 : vector<16x32xf32>
    %171 = vector.broadcast %148 : vector<1x32xf32> to vector<16x32xf32>
    %172 = arith.mulf %170, %171 : vector<16x32xf32>
    %173 = vector.broadcast %150 : vector<1x32xf32> to vector<16x32xf32>
    %174 = arith.addf %172, %173 : vector<16x32xf32>
    %c0_61 = arith.constant 0 : index
    %c0_62 = arith.constant 0 : index
    %c0_63 = arith.constant 0 : index
    %175 = vector.load %arg9[%c0_61, %c0_62, %c0_63] : memref<2x32x128xf32, #tpu.memory_space<vmem>>, vector<1x32x128xf32>
    %176 = vector.shape_cast %175 : vector<1x32x128xf32> to vector<32x128xf32>
    %cst_64 = arith.constant dense<0.000000e+00> : vector<16x128xf32>
    %177 = tpu.matmul %174, %176, %cst_64 {dimension_numbers = #tpu.dot_dimension_numbers<[1], [0], [0], [1], [0, 0, 1, 1], [], []>} : vector<16x32xf32>, vector<32x128xf32>, vector<16x128xf32> -> vector<16x128xf32>
    %c0_65 = arith.constant 0 : index
    %c0_66 = arith.constant 0 : index
    %c0_67 = arith.constant 0 : index
    %178 = vector.load %arg10[%c0_65, %c0_66, %c0_67] : memref<2x1x128xf32, #tpu.memory_space<vmem>>, vector<1x1x128xf32>
    %179 = vector.shape_cast %178 : vector<1x1x128xf32> to vector<1x128xf32>
    %180 = vector.broadcast %179 : vector<1x128xf32> to vector<16x128xf32>
    %181 = arith.addf %177, %180 : vector<16x128xf32>
    %cst_68 = arith.constant 5.000000e-01 : f32
    %182 = vector.broadcast %cst_68 : f32 to vector<16x128xf32>
    %183 = arith.mulf %182, %181 : vector<16x128xf32>
    %cst_69 = arith.constant 4.471500e-02 : f32
    %184 = vector.broadcast %cst_69 : f32 to vector<16x128xf32>
    %185 = arith.mulf %184, %181 : vector<16x128xf32>
    %186 = arith.mulf %185, %181 : vector<16x128xf32>
    %187 = arith.mulf %186, %181 : vector<16x128xf32>
    %188 = arith.addf %181, %187 : vector<16x128xf32>
    %cst_70 = arith.constant 0.797884583 : f32
    %189 = vector.broadcast %cst_70 : f32 to vector<16x128xf32>
    %190 = arith.mulf %189, %188 : vector<16x128xf32>
    %191 = math.tanh %190 : vector<16x128xf32>
    %cst_71 = arith.constant 1.000000e+00 : f32
    %192 = vector.broadcast %cst_71 : f32 to vector<16x128xf32>
    %193 = arith.addf %192, %191 : vector<16x128xf32>
    %194 = arith.mulf %183, %193 : vector<16x128xf32>
    %c0_72 = arith.constant 0 : index
    %c0_73 = arith.constant 0 : index
    %c0_74 = arith.constant 0 : index
    %195 = vector.load %arg11[%c0_72, %c0_73, %c0_74] : memref<2x128x32xf32, #tpu.memory_space<vmem>>, vector<1x128x32xf32>
    %196 = vector.shape_cast %195 : vector<1x128x32xf32> to vector<128x32xf32>
    %cst_75 = arith.constant dense<0.000000e+00> : vector<16x32xf32>
    %197 = tpu.matmul %194, %196, %cst_75 {dimension_numbers = #tpu.dot_dimension_numbers<[1], [0], [0], [1], [0, 0, 1, 1], [], []>} : vector<16x128xf32>, vector<128x32xf32>, vector<16x32xf32> -> vector<16x32xf32>
    %198 = arith.addf %146, %197 : vector<16x32xf32>
    %c0_76 = arith.constant 0 : index
    %c0_77 = arith.constant 0 : index
    %c0_78 = arith.constant 0 : index
    %199 = vector.load %arg12[%c0_76, %c0_77, %c0_78] : memref<2x1x32xf32, #tpu.memory_space<vmem>>, vector<1x1x32xf32>
    %200 = vector.shape_cast %199 : vector<1x1x32xf32> to vector<1x32xf32>
    %201 = vector.broadcast %200 : vector<1x32xf32> to vector<16x32xf32>
    %202 = arith.addf %198, %201 : vector<16x32xf32>
    %c1 = arith.constant 1 : index
    %c0_79 = arith.constant 0 : index
    %c0_80 = arith.constant 0 : index
    %203 = vector.load %arg1[%c1, %c0_79, %c0_80] : memref<2x1x32xf32, #tpu.memory_space<vmem>>, vector<1x1x32xf32>
    %204 = vector.shape_cast %203 : vector<1x1x32xf32> to vector<1x32xf32>
    %c1_81 = arith.constant 1 : index
    %c0_82 = arith.constant 0 : index
    %c0_83 = arith.constant 0 : index
    %205 = vector.load %arg2[%c1_81, %c0_82, %c0_83] : memref<2x1x32xf32, #tpu.memory_space<vmem>>, vector<1x1x32xf32>
    %206 = vector.shape_cast %205 : vector<1x1x32xf32> to vector<1x32xf32>
    %cst_84 = arith.constant dense<0.000000e+00> : vector<16xf32>
    %207 = vector.multi_reduction <add>, %202, %cst_84 [1] : vector<16x32xf32> to vector<16xf32>
    %208 = vector.shape_cast %207 : vector<16xf32> to vector<16x1xf32>
    %cst_85 = arith.constant 3.200000e+01 : f32
    %209 = vector.broadcast %cst_85 : f32 to vector<16x1xf32>
    %210 = arith.divf %208, %209 : vector<16x1xf32>
    %211 = vector.broadcast %210 : vector<16x1xf32> to vector<16x32xf32>
    %212 = arith.subf %202, %211 : vector<16x32xf32>
    %213 = vector.broadcast %210 : vector<16x1xf32> to vector<16x32xf32>
    %214 = arith.subf %202, %213 : vector<16x32xf32>
    %215 = arith.mulf %212, %214 : vector<16x32xf32>
    %cst_86 = arith.constant dense<0.000000e+00> : vector<16xf32>
    %216 = vector.multi_reduction <add>, %215, %cst_86 [1] : vector<16x32xf32> to vector<16xf32>
    %217 = vector.shape_cast %216 : vector<16xf32> to vector<16x1xf32>
    %cst_87 = arith.constant 3.200000e+01 : f32
    %218 = vector.broadcast %cst_87 : f32 to vector<16x1xf32>
    %219 = arith.divf %217, %218 : vector<16x1xf32>
    %220 = vector.broadcast %210 : vector<16x1xf32> to vector<16x32xf32>
    %221 = arith.subf %202, %220 : vector<16x32xf32>
    %cst_88 = arith.constant 9.99999974E-6 : f32
    %222 = vector.broadcast %cst_88 : f32 to vector<16x1xf32>
    %223 = arith.addf %219, %222 : vector<16x1xf32>
    %224 = math.rsqrt %223 : vector<16x1xf32>
    %225 = vector.broadcast %224 : vector<16x1xf32> to vector<16x32xf32>
    %226 = arith.mulf %221, %225 : vector<16x32xf32>
    %227 = vector.broadcast %204 : vector<1x32xf32> to vector<16x32xf32>
    %228 = arith.mulf %226, %227 : vector<16x32xf32>
    %229 = vector.broadcast %206 : vector<1x32xf32> to vector<16x32xf32>
    %230 = arith.addf %228, %229 : vector<16x32xf32>
    %c1_89 = arith.constant 1 : index
    %c0_90 = arith.constant 0 : index
    %c0_91 = arith.constant 0 : index
    %231 = vector.load %arg3[%c1_89, %c0_90, %c0_91] : memref<2x32x96xf32, #tpu.memory_space<vmem>>, vector<1x32x96xf32>
    %232 = vector.shape_cast %231 : vector<1x32x96xf32> to vector<32x96xf32>
    %cst_92 = arith.constant dense<0.000000e+00> : vector<16x96xf32>
    %233 = tpu.matmul %230, %232, %cst_92 {dimension_numbers = #tpu.dot_dimension_numbers<[1], [0], [0], [1], [0, 0, 1, 1], [], []>} : vector<16x32xf32>, vector<32x96xf32>, vector<16x96xf32> -> vector<16x96xf32>
    %c1_93 = arith.constant 1 : index
    %c0_94 = arith.constant 0 : index
    %c0_95 = arith.constant 0 : index
    %234 = vector.load %arg4[%c1_93, %c0_94, %c0_95] : memref<2x1x96xf32, #tpu.memory_space<vmem>>, vector<1x1x96xf32>
    %235 = vector.shape_cast %234 : vector<1x1x96xf32> to vector<1x96xf32>
    %236 = vector.broadcast %235 : vector<1x96xf32> to vector<16x96xf32>
    %237 = arith.addf %233, %236 : vector<16x96xf32>
    %238 = vector.extract_strided_slice %237 {offsets = [0, 0], sizes = [16, 32], strides = [1, 1]} : vector<16x96xf32> to vector<16x32xf32>
    %cst_96 = arith.constant 0.353553385 : f32
    %239 = vector.broadcast %cst_96 : f32 to vector<16x32xf32>
    %240 = arith.mulf %238, %239 : vector<16x32xf32>
    %241 = vector.shape_cast %240 : vector<16x32xf32> to vector<2x8x32xf32>
    %242 = vector.extract_strided_slice %237 {offsets = [0, 32], sizes = [16, 32], strides = [1, 1]} : vector<16x96xf32> to vector<16x32xf32>
    %243 = vector.shape_cast %242 : vector<16x32xf32> to vector<2x8x32xf32>
    %244 = vector.extract_strided_slice %237 {offsets = [0, 64], sizes = [16, 32], strides = [1, 1]} : vector<16x96xf32> to vector<16x32xf32>
    %245 = vector.shape_cast %244 : vector<16x32xf32> to vector<2x8x32xf32>
    %c1_97 = arith.constant 1 : index
    %c0_98 = arith.constant 0 : index
    %c0_99 = arith.constant 0 : index
    %246 = vector.load %arg5[%c1_97, %c0_98, %c0_99] : memref<2x32x32xf32, #tpu.memory_space<vmem>>, vector<1x32x32xf32>
    %247 = vector.shape_cast %246 : vector<1x32x32xf32> to vector<32x32xf32>
    %cst_100 = arith.constant 0.000000e+00 : f32
    %248 = vector.broadcast %cst_100 : f32 to vector<16x32xf32>
    %249 = vector.extract_strided_slice %241 {offsets = [0, 0, 0], sizes = [2, 8, 8], strides = [1, 1, 1]} : vector<2x8x32xf32> to vector<2x8x8xf32>
    %250 = vector.extract_strided_slice %243 {offsets = [0, 0, 0], sizes = [2, 8, 8], strides = [1, 1, 1]} : vector<2x8x32xf32> to vector<2x8x8xf32>
    %251 = vector.extract_strided_slice %245 {offsets = [0, 0, 0], sizes = [2, 8, 8], strides = [1, 1, 1]} : vector<2x8x32xf32> to vector<2x8x8xf32>
    "tpu.trace_start"() <{level = 10 : i32, message = "bqd,bkd->bqk"}> : () -> ()
    %cst_101 = arith.constant dense<0.000000e+00> : vector<2x8x8xf32>
    %252 = tpu.matmul %249, %250, %cst_101 {dimension_numbers = #tpu.dot_dimension_numbers<[2], [2], [1], [1], [0, 0, 0, 1, 1, 1], [0], [0]>} : vector<2x8x8xf32>, vector<2x8x8xf32>, vector<2x8x8xf32> -> vector<2x8x8xf32>
    %cst_102 = arith.constant -1.000000e+30 : f32
    "tpu.trace_stop"() : () -> ()
    %253 = vector.shape_cast %3 : vector<1x8x8xi1> to vector<1x8x8xi1>
    %254 = vector.broadcast %253 : vector<1x8x8xi1> to vector<2x8x8xi1>
    %255 = vector.broadcast %cst_102 : f32 to vector<2x8x8xf32>
    %256 = arith.select %254, %252, %255 : vector<2x8x8xi1>, vector<2x8x8xf32>
    %cst_103 = arith.constant dense<0xFF800000> : vector<2x8xf32>
    %257 = vector.multi_reduction <maximumf>, %256, %cst_103 [2] : vector<2x8x8xf32> to vector<2x8xf32>
    %258 = vector.shape_cast %257 : vector<2x8xf32> to vector<2x8x1xf32>
    %259 = vector.broadcast %258 : vector<2x8x1xf32> to vector<2x8x8xf32>
    %260 = arith.subf %256, %259 : vector<2x8x8xf32>
    %261 = math.exp %260 : vector<2x8x8xf32>
    %cst_104 = arith.constant dense<0.000000e+00> : vector<2x8xf32>
    %262 = vector.multi_reduction <add>, %261, %cst_104 [2] : vector<2x8x8xf32> to vector<2x8xf32>
    %263 = vector.shape_cast %262 : vector<2x8xf32> to vector<2x8x1xf32>
    %264 = tpu.reciprocal %263 {approx = true} : vector<2x8x1xf32> -> vector<2x8x1xf32>
    %265 = vector.broadcast %264 : vector<2x8x1xf32> to vector<2x8x8xf32>
    %266 = arith.mulf %261, %265 : vector<2x8x8xf32>
    "tpu.trace_start"() <{level = 10 : i32, message = "bqk,bkd->bqd"}> : () -> ()
    %cst_105 = arith.constant dense<0.000000e+00> : vector<2x8x8xf32>
    %267 = tpu.matmul %266, %251, %cst_105 {dimension_numbers = #tpu.dot_dimension_numbers<[2], [1], [1], [2], [0, 0, 0, 1, 1, 2], [0], [0]>} : vector<2x8x8xf32>, vector<2x8x8xf32>, vector<2x8x8xf32> -> vector<2x8x8xf32>
    "tpu.trace_stop"() : () -> ()
    %268 = vector.shape_cast %267 : vector<2x8x8xf32> to vector<16x8xf32>
    %269 = vector.extract_strided_slice %247 {offsets = [0, 0], sizes = [8, 32], strides = [1, 1]} : vector<32x32xf32> to vector<8x32xf32>
    %cst_106 = arith.constant dense<0.000000e+00> : vector<16x32xf32>
    %270 = tpu.matmul %268, %269, %cst_106 {dimension_numbers = #tpu.dot_dimension_numbers<[1], [0], [0], [1], [0, 0, 1, 1], [], []>} : vector<16x8xf32>, vector<8x32xf32>, vector<16x32xf32> -> vector<16x32xf32>
    %271 = arith.addf %248, %270 : vector<16x32xf32>
    %272 = vector.extract_strided_slice %241 {offsets = [0, 0, 8], sizes = [2, 8, 8], strides = [1, 1, 1]} : vector<2x8x32xf32> to vector<2x8x8xf32>
    %273 = vector.extract_strided_slice %243 {offsets = [0, 0, 8], sizes = [2, 8, 8], strides = [1, 1, 1]} : vector<2x8x32xf32> to vector<2x8x8xf32>
    %274 = vector.extract_strided_slice %245 {offsets = [0, 0, 8], sizes = [2, 8, 8], strides = [1, 1, 1]} : vector<2x8x32xf32> to vector<2x8x8xf32>
    "tpu.trace_start"() <{level = 10 : i32, message = "bqd,bkd->bqk"}> : () -> ()
    %cst_107 = arith.constant dense<0.000000e+00> : vector<2x8x8xf32>
    %275 = tpu.matmul %272, %273, %cst_107 {dimension_numbers = #tpu.dot_dimension_numbers<[2], [2], [1], [1], [0, 0, 0, 1, 1, 1], [0], [0]>} : vector<2x8x8xf32>, vector<2x8x8xf32>, vector<2x8x8xf32> -> vector<2x8x8xf32>
    %cst_108 = arith.constant -1.000000e+30 : f32
    "tpu.trace_stop"() : () -> ()
    %276 = vector.shape_cast %3 : vector<1x8x8xi1> to vector<1x8x8xi1>
    %277 = vector.broadcast %276 : vector<1x8x8xi1> to vector<2x8x8xi1>
    %278 = vector.broadcast %cst_108 : f32 to vector<2x8x8xf32>
    %279 = arith.select %277, %275, %278 : vector<2x8x8xi1>, vector<2x8x8xf32>
    %cst_109 = arith.constant dense<0xFF800000> : vector<2x8xf32>
    %280 = vector.multi_reduction <maximumf>, %279, %cst_109 [2] : vector<2x8x8xf32> to vector<2x8xf32>
    %281 = vector.shape_cast %280 : vector<2x8xf32> to vector<2x8x1xf32>
    %282 = vector.broadcast %281 : vector<2x8x1xf32> to vector<2x8x8xf32>
    %283 = arith.subf %279, %282 : vector<2x8x8xf32>
    %284 = math.exp %283 : vector<2x8x8xf32>
    %cst_110 = arith.constant dense<0.000000e+00> : vector<2x8xf32>
    %285 = vector.multi_reduction <add>, %284, %cst_110 [2] : vector<2x8x8xf32> to vector<2x8xf32>
    %286 = vector.shape_cast %285 : vector<2x8xf32> to vector<2x8x1xf32>
    %287 = tpu.reciprocal %286 {approx = true} : vector<2x8x1xf32> -> vector<2x8x1xf32>
    %288 = vector.broadcast %287 : vector<2x8x1xf32> to vector<2x8x8xf32>
    %289 = arith.mulf %284, %288 : vector<2x8x8xf32>
    "tpu.trace_start"() <{level = 10 : i32, message = "bqk,bkd->bqd"}> : () -> ()
    %cst_111 = arith.constant dense<0.000000e+00> : vector<2x8x8xf32>
    %290 = tpu.matmul %289, %274, %cst_111 {dimension_numbers = #tpu.dot_dimension_numbers<[2], [1], [1], [2], [0, 0, 0, 1, 1, 2], [0], [0]>} : vector<2x8x8xf32>, vector<2x8x8xf32>, vector<2x8x8xf32> -> vector<2x8x8xf32>
    "tpu.trace_stop"() : () -> ()
    %291 = vector.shape_cast %290 : vector<2x8x8xf32> to vector<16x8xf32>
    %292 = vector.extract_strided_slice %247 {offsets = [8, 0], sizes = [8, 32], strides = [1, 1]} : vector<32x32xf32> to vector<8x32xf32>
    %cst_112 = arith.constant dense<0.000000e+00> : vector<16x32xf32>
    %293 = tpu.matmul %291, %292, %cst_112 {dimension_numbers = #tpu.dot_dimension_numbers<[1], [0], [0], [1], [0, 0, 1, 1], [], []>} : vector<16x8xf32>, vector<8x32xf32>, vector<16x32xf32> -> vector<16x32xf32>
    %294 = arith.addf %271, %293 : vector<16x32xf32>
    %295 = vector.extract_strided_slice %241 {offsets = [0, 0, 16], sizes = [2, 8, 8], strides = [1, 1, 1]} : vector<2x8x32xf32> to vector<2x8x8xf32>
    %296 = vector.extract_strided_slice %243 {offsets = [0, 0, 16], sizes = [2, 8, 8], strides = [1, 1, 1]} : vector<2x8x32xf32> to vector<2x8x8xf32>
    %297 = vector.extract_strided_slice %245 {offsets = [0, 0, 16], sizes = [2, 8, 8], strides = [1, 1, 1]} : vector<2x8x32xf32> to vector<2x8x8xf32>
    "tpu.trace_start"() <{level = 10 : i32, message = "bqd,bkd->bqk"}> : () -> ()
    %cst_113 = arith.constant dense<0.000000e+00> : vector<2x8x8xf32>
    %298 = tpu.matmul %295, %296, %cst_113 {dimension_numbers = #tpu.dot_dimension_numbers<[2], [2], [1], [1], [0, 0, 0, 1, 1, 1], [0], [0]>} : vector<2x8x8xf32>, vector<2x8x8xf32>, vector<2x8x8xf32> -> vector<2x8x8xf32>
    %cst_114 = arith.constant -1.000000e+30 : f32
    "tpu.trace_stop"() : () -> ()
    %299 = vector.shape_cast %3 : vector<1x8x8xi1> to vector<1x8x8xi1>
    %300 = vector.broadcast %299 : vector<1x8x8xi1> to vector<2x8x8xi1>
    %301 = vector.broadcast %cst_114 : f32 to vector<2x8x8xf32>
    %302 = arith.select %300, %298, %301 : vector<2x8x8xi1>, vector<2x8x8xf32>
    %cst_115 = arith.constant dense<0xFF800000> : vector<2x8xf32>
    %303 = vector.multi_reduction <maximumf>, %302, %cst_115 [2] : vector<2x8x8xf32> to vector<2x8xf32>
    %304 = vector.shape_cast %303 : vector<2x8xf32> to vector<2x8x1xf32>
    %305 = vector.broadcast %304 : vector<2x8x1xf32> to vector<2x8x8xf32>
    %306 = arith.subf %302, %305 : vector<2x8x8xf32>
    %307 = math.exp %306 : vector<2x8x8xf32>
    %cst_116 = arith.constant dense<0.000000e+00> : vector<2x8xf32>
    %308 = vector.multi_reduction <add>, %307, %cst_116 [2] : vector<2x8x8xf32> to vector<2x8xf32>
    %309 = vector.shape_cast %308 : vector<2x8xf32> to vector<2x8x1xf32>
    %310 = tpu.reciprocal %309 {approx = true} : vector<2x8x1xf32> -> vector<2x8x1xf32>
    %311 = vector.broadcast %310 : vector<2x8x1xf32> to vector<2x8x8xf32>
    %312 = arith.mulf %307, %311 : vector<2x8x8xf32>
    "tpu.trace_start"() <{level = 10 : i32, message = "bqk,bkd->bqd"}> : () -> ()
    %cst_117 = arith.constant dense<0.000000e+00> : vector<2x8x8xf32>
    %313 = tpu.matmul %312, %297, %cst_117 {dimension_numbers = #tpu.dot_dimension_numbers<[2], [1], [1], [2], [0, 0, 0, 1, 1, 2], [0], [0]>} : vector<2x8x8xf32>, vector<2x8x8xf32>, vector<2x8x8xf32> -> vector<2x8x8xf32>
    "tpu.trace_stop"() : () -> ()
    %314 = vector.shape_cast %313 : vector<2x8x8xf32> to vector<16x8xf32>
    %315 = vector.extract_strided_slice %247 {offsets = [16, 0], sizes = [8, 32], strides = [1, 1]} : vector<32x32xf32> to vector<8x32xf32>
    %cst_118 = arith.constant dense<0.000000e+00> : vector<16x32xf32>
    %316 = tpu.matmul %314, %315, %cst_118 {dimension_numbers = #tpu.dot_dimension_numbers<[1], [0], [0], [1], [0, 0, 1, 1], [], []>} : vector<16x8xf32>, vector<8x32xf32>, vector<16x32xf32> -> vector<16x32xf32>
    %317 = arith.addf %294, %316 : vector<16x32xf32>
    %318 = vector.extract_strided_slice %241 {offsets = [0, 0, 24], sizes = [2, 8, 8], strides = [1, 1, 1]} : vector<2x8x32xf32> to vector<2x8x8xf32>
    %319 = vector.extract_strided_slice %243 {offsets = [0, 0, 24], sizes = [2, 8, 8], strides = [1, 1, 1]} : vector<2x8x32xf32> to vector<2x8x8xf32>
    %320 = vector.extract_strided_slice %245 {offsets = [0, 0, 24], sizes = [2, 8, 8], strides = [1, 1, 1]} : vector<2x8x32xf32> to vector<2x8x8xf32>
    "tpu.trace_start"() <{level = 10 : i32, message = "bqd,bkd->bqk"}> : () -> ()
    %cst_119 = arith.constant dense<0.000000e+00> : vector<2x8x8xf32>
    %321 = tpu.matmul %318, %319, %cst_119 {dimension_numbers = #tpu.dot_dimension_numbers<[2], [2], [1], [1], [0, 0, 0, 1, 1, 1], [0], [0]>} : vector<2x8x8xf32>, vector<2x8x8xf32>, vector<2x8x8xf32> -> vector<2x8x8xf32>
    %cst_120 = arith.constant -1.000000e+30 : f32
    "tpu.trace_stop"() : () -> ()
    %322 = vector.shape_cast %3 : vector<1x8x8xi1> to vector<1x8x8xi1>
    %323 = vector.broadcast %322 : vector<1x8x8xi1> to vector<2x8x8xi1>
    %324 = vector.broadcast %cst_120 : f32 to vector<2x8x8xf32>
    %325 = arith.select %323, %321, %324 : vector<2x8x8xi1>, vector<2x8x8xf32>
    %cst_121 = arith.constant dense<0xFF800000> : vector<2x8xf32>
    %326 = vector.multi_reduction <maximumf>, %325, %cst_121 [2] : vector<2x8x8xf32> to vector<2x8xf32>
    %327 = vector.shape_cast %326 : vector<2x8xf32> to vector<2x8x1xf32>
    %328 = vector.broadcast %327 : vector<2x8x1xf32> to vector<2x8x8xf32>
    %329 = arith.subf %325, %328 : vector<2x8x8xf32>
    %330 = math.exp %329 : vector<2x8x8xf32>
    %cst_122 = arith.constant dense<0.000000e+00> : vector<2x8xf32>
    %331 = vector.multi_reduction <add>, %330, %cst_122 [2] : vector<2x8x8xf32> to vector<2x8xf32>
    %332 = vector.shape_cast %331 : vector<2x8xf32> to vector<2x8x1xf32>
    %333 = tpu.reciprocal %332 {approx = true} : vector<2x8x1xf32> -> vector<2x8x1xf32>
    %334 = vector.broadcast %333 : vector<2x8x1xf32> to vector<2x8x8xf32>
    %335 = arith.mulf %330, %334 : vector<2x8x8xf32>
    "tpu.trace_start"() <{level = 10 : i32, message = "bqk,bkd->bqd"}> : () -> ()
    %cst_123 = arith.constant dense<0.000000e+00> : vector<2x8x8xf32>
    %336 = tpu.matmul %335, %320, %cst_123 {dimension_numbers = #tpu.dot_dimension_numbers<[2], [1], [1], [2], [0, 0, 0, 1, 1, 2], [0], [0]>} : vector<2x8x8xf32>, vector<2x8x8xf32>, vector<2x8x8xf32> -> vector<2x8x8xf32>
    "tpu.trace_stop"() : () -> ()
    %337 = vector.shape_cast %336 : vector<2x8x8xf32> to vector<16x8xf32>
    %338 = vector.extract_strided_slice %247 {offsets = [24, 0], sizes = [8, 32], strides = [1, 1]} : vector<32x32xf32> to vector<8x32xf32>
    %cst_124 = arith.constant dense<0.000000e+00> : vector<16x32xf32>
    %339 = tpu.matmul %337, %338, %cst_124 {dimension_numbers = #tpu.dot_dimension_numbers<[1], [0], [0], [1], [0, 0, 1, 1], [], []>} : vector<16x8xf32>, vector<8x32xf32>, vector<16x32xf32> -> vector<16x32xf32>
    %340 = arith.addf %317, %339 : vector<16x32xf32>
    %341 = arith.addf %202, %340 : vector<16x32xf32>
    %c1_125 = arith.constant 1 : index
    %c0_126 = arith.constant 0 : index
    %c0_127 = arith.constant 0 : index
    %342 = vector.load %arg6[%c1_125, %c0_126, %c0_127] : memref<2x1x32xf32, #tpu.memory_space<vmem>>, vector<1x1x32xf32>
    %343 = vector.shape_cast %342 : vector<1x1x32xf32> to vector<1x32xf32>
    %344 = vector.broadcast %343 : vector<1x32xf32> to vector<16x32xf32>
    %345 = arith.addf %341, %344 : vector<16x32xf32>
    %c1_128 = arith.constant 1 : index
    %c0_129 = arith.constant 0 : index
    %c0_130 = arith.constant 0 : index
    %346 = vector.load %arg7[%c1_128, %c0_129, %c0_130] : memref<2x1x32xf32, #tpu.memory_space<vmem>>, vector<1x1x32xf32>
    %347 = vector.shape_cast %346 : vector<1x1x32xf32> to vector<1x32xf32>
    %c1_131 = arith.constant 1 : index
    %c0_132 = arith.constant 0 : index
    %c0_133 = arith.constant 0 : index
    %348 = vector.load %arg8[%c1_131, %c0_132, %c0_133] : memref<2x1x32xf32, #tpu.memory_space<vmem>>, vector<1x1x32xf32>
    %349 = vector.shape_cast %348 : vector<1x1x32xf32> to vector<1x32xf32>
    %cst_134 = arith.constant dense<0.000000e+00> : vector<16xf32>
    %350 = vector.multi_reduction <add>, %345, %cst_134 [1] : vector<16x32xf32> to vector<16xf32>
    %351 = vector.shape_cast %350 : vector<16xf32> to vector<16x1xf32>
    %cst_135 = arith.constant 3.200000e+01 : f32
    %352 = vector.broadcast %cst_135 : f32 to vector<16x1xf32>
    %353 = arith.divf %351, %352 : vector<16x1xf32>
    %354 = vector.broadcast %353 : vector<16x1xf32> to vector<16x32xf32>
    %355 = arith.subf %345, %354 : vector<16x32xf32>
    %356 = vector.broadcast %353 : vector<16x1xf32> to vector<16x32xf32>
    %357 = arith.subf %345, %356 : vector<16x32xf32>
    %358 = arith.mulf %355, %357 : vector<16x32xf32>
    %cst_136 = arith.constant dense<0.000000e+00> : vector<16xf32>
    %359 = vector.multi_reduction <add>, %358, %cst_136 [1] : vector<16x32xf32> to vector<16xf32>
    %360 = vector.shape_cast %359 : vector<16xf32> to vector<16x1xf32>
    %cst_137 = arith.constant 3.200000e+01 : f32
    %361 = vector.broadcast %cst_137 : f32 to vector<16x1xf32>
    %362 = arith.divf %360, %361 : vector<16x1xf32>
    %363 = vector.broadcast %353 : vector<16x1xf32> to vector<16x32xf32>
    %364 = arith.subf %345, %363 : vector<16x32xf32>
    %cst_138 = arith.constant 9.99999974E-6 : f32
    %365 = vector.broadcast %cst_138 : f32 to vector<16x1xf32>
    %366 = arith.addf %362, %365 : vector<16x1xf32>
    %367 = math.rsqrt %366 : vector<16x1xf32>
    %368 = vector.broadcast %367 : vector<16x1xf32> to vector<16x32xf32>
    %369 = arith.mulf %364, %368 : vector<16x32xf32>
    %370 = vector.broadcast %347 : vector<1x32xf32> to vector<16x32xf32>
    %371 = arith.mulf %369, %370 : vector<16x32xf32>
    %372 = vector.broadcast %349 : vector<1x32xf32> to vector<16x32xf32>
    %373 = arith.addf %371, %372 : vector<16x32xf32>
    %c1_139 = arith.constant 1 : index
    %c0_140 = arith.constant 0 : index
    %c0_141 = arith.constant 0 : index
    %374 = vector.load %arg9[%c1_139, %c0_140, %c0_141] : memref<2x32x128xf32, #tpu.memory_space<vmem>>, vector<1x32x128xf32>
    %375 = vector.shape_cast %374 : vector<1x32x128xf32> to vector<32x128xf32>
    %cst_142 = arith.constant dense<0.000000e+00> : vector<16x128xf32>
    %376 = tpu.matmul %373, %375, %cst_142 {dimension_numbers = #tpu.dot_dimension_numbers<[1], [0], [0], [1], [0, 0, 1, 1], [], []>} : vector<16x32xf32>, vector<32x128xf32>, vector<16x128xf32> -> vector<16x128xf32>
    %c1_143 = arith.constant 1 : index
    %c0_144 = arith.constant 0 : index
    %c0_145 = arith.constant 0 : index
    %377 = vector.load %arg10[%c1_143, %c0_144, %c0_145] : memref<2x1x128xf32, #tpu.memory_space<vmem>>, vector<1x1x128xf32>
    %378 = vector.shape_cast %377 : vector<1x1x128xf32> to vector<1x128xf32>
    %379 = vector.broadcast %378 : vector<1x128xf32> to vector<16x128xf32>
    %380 = arith.addf %376, %379 : vector<16x128xf32>
    %cst_146 = arith.constant 5.000000e-01 : f32
    %381 = vector.broadcast %cst_146 : f32 to vector<16x128xf32>
    %382 = arith.mulf %381, %380 : vector<16x128xf32>
    %cst_147 = arith.constant 4.471500e-02 : f32
    %383 = vector.broadcast %cst_147 : f32 to vector<16x128xf32>
    %384 = arith.mulf %383, %380 : vector<16x128xf32>
    %385 = arith.mulf %384, %380 : vector<16x128xf32>
    %386 = arith.mulf %385, %380 : vector<16x128xf32>
    %387 = arith.addf %380, %386 : vector<16x128xf32>
    %cst_148 = arith.constant 0.797884583 : f32
    %388 = vector.broadcast %cst_148 : f32 to vector<16x128xf32>
    %389 = arith.mulf %388, %387 : vector<16x128xf32>
    %390 = math.tanh %389 : vector<16x128xf32>
    %cst_149 = arith.constant 1.000000e+00 : f32
    %391 = vector.broadcast %cst_149 : f32 to vector<16x128xf32>
    %392 = arith.addf %391, %390 : vector<16x128xf32>
    %393 = arith.mulf %382, %392 : vector<16x128xf32>
    %c1_150 = arith.constant 1 : index
    %c0_151 = arith.constant 0 : index
    %c0_152 = arith.constant 0 : index
    %394 = vector.load %arg11[%c1_150, %c0_151, %c0_152] : memref<2x128x32xf32, #tpu.memory_space<vmem>>, vector<1x128x32xf32>
    %395 = vector.shape_cast %394 : vector<1x128x32xf32> to vector<128x32xf32>
    %cst_153 = arith.constant dense<0.000000e+00> : vector<16x32xf32>
    %396 = tpu.matmul %393, %395, %cst_153 {dimension_numbers = #tpu.dot_dimension_numbers<[1], [0], [0], [1], [0, 0, 1, 1], [], []>} : vector<16x128xf32>, vector<128x32xf32>, vector<16x32xf32> -> vector<16x32xf32>
    %397 = arith.addf %345, %396 : vector<16x32xf32>
    %c1_154 = arith.constant 1 : index
    %c0_155 = arith.constant 0 : index
    %c0_156 = arith.constant 0 : index
    %398 = vector.load %arg12[%c1_154, %c0_155, %c0_156] : memref<2x1x32xf32, #tpu.memory_space<vmem>>, vector<1x1x32xf32>
    %399 = vector.shape_cast %398 : vector<1x1x32xf32> to vector<1x32xf32>
    %400 = vector.broadcast %399 : vector<1x32xf32> to vector<16x32xf32>
    %401 = arith.addf %397, %400 : vector<16x32xf32>
    %c0_157 = arith.constant 0 : index
    %c0_158 = arith.constant 0 : index
    %402 = vector.load %arg13[%c0_157, %c0_158] : memref<1x32xf32, #tpu.memory_space<vmem>>, vector<1x32xf32>
    %c0_159 = arith.constant 0 : index
    %c0_160 = arith.constant 0 : index
    %403 = vector.load %arg14[%c0_159, %c0_160] : memref<1x32xf32, #tpu.memory_space<vmem>>, vector<1x32xf32>
    %cst_161 = arith.constant dense<0.000000e+00> : vector<16xf32>
    %404 = vector.multi_reduction <add>, %401, %cst_161 [1] : vector<16x32xf32> to vector<16xf32>
    %405 = vector.shape_cast %404 : vector<16xf32> to vector<16x1xf32>
    %cst_162 = arith.constant 3.200000e+01 : f32
    %406 = vector.broadcast %cst_162 : f32 to vector<16x1xf32>
    %407 = arith.divf %405, %406 : vector<16x1xf32>
    %408 = vector.broadcast %407 : vector<16x1xf32> to vector<16x32xf32>
    %409 = arith.subf %401, %408 : vector<16x32xf32>
    %410 = vector.broadcast %407 : vector<16x1xf32> to vector<16x32xf32>
    %411 = arith.subf %401, %410 : vector<16x32xf32>
    %412 = arith.mulf %409, %411 : vector<16x32xf32>
    %cst_163 = arith.constant dense<0.000000e+00> : vector<16xf32>
    %413 = vector.multi_reduction <add>, %412, %cst_163 [1] : vector<16x32xf32> to vector<16xf32>
    %414 = vector.shape_cast %413 : vector<16xf32> to vector<16x1xf32>
    %cst_164 = arith.constant 3.200000e+01 : f32
    %415 = vector.broadcast %cst_164 : f32 to vector<16x1xf32>
    %416 = arith.divf %414, %415 : vector<16x1xf32>
    %417 = vector.broadcast %407 : vector<16x1xf32> to vector<16x32xf32>
    %418 = arith.subf %401, %417 : vector<16x32xf32>
    %cst_165 = arith.constant 9.99999974E-6 : f32
    %419 = vector.broadcast %cst_165 : f32 to vector<16x1xf32>
    %420 = arith.addf %416, %419 : vector<16x1xf32>
    %421 = math.rsqrt %420 : vector<16x1xf32>
    %422 = vector.broadcast %421 : vector<16x1xf32> to vector<16x32xf32>
    %423 = arith.mulf %418, %422 : vector<16x32xf32>
    %424 = vector.broadcast %402 : vector<1x32xf32> to vector<16x32xf32>
    %425 = arith.mulf %423, %424 : vector<16x32xf32>
    %426 = vector.broadcast %403 : vector<1x32xf32> to vector<16x32xf32>
    %427 = arith.addf %425, %426 : vector<16x32xf32>
    %428 = vector.shape_cast %427 : vector<16x32xf32> to vector<2x8x32xf32>
    %429 = vector.extract_strided_slice %428 {offsets = [0, 7, 0], sizes = [2, 1, 32], strides = [1, 1, 1]} : vector<2x8x32xf32> to vector<2x1x32xf32>
    %430 = vector.shape_cast %429 : vector<2x1x32xf32> to vector<2x32xf32>
    %c0_166 = arith.constant 0 : index
    %c0_167 = arith.constant 0 : index
    %431 = vector.load %arg15[%c0_166, %c0_167] : memref<32x128xf32, #tpu.memory_space<vmem>>, vector<32x128xf32>
    %cst_168 = arith.constant dense<0.000000e+00> : vector<2x128xf32>
    %432 = tpu.matmul %430, %431, %cst_168 {dimension_numbers = #tpu.dot_dimension_numbers<[1], [0], [0], [1], [0, 0, 1, 1], [], []>} : vector<2x32xf32>, vector<32x128xf32>, vector<2x128xf32> -> vector<2x128xf32>
    %c0_169 = arith.constant 0 : index
    %c0_170 = arith.constant 0 : index
    %433 = vector.load %arg16[%c0_169, %c0_170] : memref<2x128xf32, #tpu.memory_space<vmem>>, vector<2x128xf32>
    tpu.vector_store %arg16[%c0_169, %c0_170], %432 {strides = array<i32>} : memref<2x128xf32, #tpu.memory_space<vmem>>, vector<2x128xf32>,
    return
  }
}

</mosaic_0001>

<llo_original>
// kernel: tpu_custom_call.1
$region0: #{tpu_custom_call.1}
  #allocation0 [shape = 'u32[]', space=smem, size = 0x4, offset = 0x4, fixed_abs, tag = 'smem constant byte address 0x4 - core index']
  #allocation1 [shape = 'u32[72,128]{1,0:T(1,128)}', space=vmem, size = 0x9000, scoped, tag = 'internal scratch']
  %s0 = inlined_call_operand.vmem [shape: f32[16,32], index: 0, kind: input, shape index: {}]
  %s1 = inlined_call_operand.vmem [shape: f32[2,1,32], index: 1, kind: input, shape index: {}]
  %s2 = inlined_call_operand.vmem [shape: f32[2,1,32], index: 2, kind: input, shape index: {}]
  %s3 = inlined_call_operand.vmem [shape: f32[2,32,96], index: 3, kind: input, shape index: {}]
  %s4 = inlined_call_operand.vmem [shape: f32[2,1,96], index: 4, kind: input, shape index: {}]
  %s5 = inlined_call_operand.vmem [shape: f32[2,32,32], index: 5, kind: input, shape index: {}]
  %s6 = inlined_call_operand.vmem [shape: f32[2,1,32], index: 6, kind: input, shape index: {}]
  %s7 = inlined_call_operand.vmem [shape: f32[2,1,32], index: 7, kind: input, shape index: {}]
  %s8 = inlined_call_operand.vmem [shape: f32[2,1,32], index: 8, kind: input, shape index: {}]
  %s9 = inlined_call_operand.vmem [shape: f32[2,32,128], index: 9, kind: input, shape index: {}]
  %s10 = inlined_call_operand.vmem [shape: f32[2,1,128], index: 10, kind: input, shape index: {}]
  %s11 = inlined_call_operand.vmem [shape: f32[2,128,32], index: 11, kind: input, shape index: {}]
  %s12 = inlined_call_operand.vmem [shape: f32[2,1,32], index: 12, kind: input, shape index: {}]
  %s13 = inlined_call_operand.vmem [shape: f32[1,32], index: 13, kind: input, shape index: {}]
  %s14 = inlined_call_operand.vmem [shape: f32[1,32], index: 14, kind: input, shape index: {}]
  %s15 = inlined_call_operand.vmem [shape: f32[32,128], index: 15, kind: input, shape index: {}]
  %s16 = inlined_call_operand.hbm [shape: f32[2,128], index: 16, kind: output, shape index: {}]
  %s17 = sld [smem:[#allocation0]]
  $region74: #{tpu_custom_call.1} parent=0
    _
  %s19 = ssub.s32 1, %s17
  %s20 = scalar_select 0, %s19, %s17
  $region1: #{tpu_custom_call.1} parent=0
    #allocation2 [shape = 'u8[1024]{0}', space=vmem, size = 0x400, scoped, tag = 'output window, operand 0, single buffered']
    #allocation3 [shape = 's32[1]{0}', space=sflag, size = 0x4, scoped, tag = 'scoped memory for tpu_custom_call.1']
    %21 = vsyncpa [#allocation3], 0
    // Predicated region
    $region2: #{tpu_custom_call.1} parent=1 // pred_check
      _
    $region3: #{tpu_custom_call.1} parent=1 // pred_check_branch
      %23 = sbr.rel (0) target = $region5
    $region4: #{tpu_custom_call.1} parent=1 // pred_region
      _
    $region5: #{tpu_custom_call.1} parent=1 // pred_fallthru
      _
    // Predicated region
    $region6: #{tpu_custom_call.1} parent=1 // pred_check
      _
    $region7: #{tpu_custom_call.1} parent=1 // pred_check_branch
      %25 = sbr.rel (0) target = $region9
    $region8: #{tpu_custom_call.1} parent=1 // pred_region
      _
    $region9: #{tpu_custom_call.1} parent=1 // pred_fallthru
      _
    // Predicated region
    $region10: #{tpu_custom_call.1} parent=1 // pred_check
      _
    $region11: #{tpu_custom_call.1} parent=1 // pred_check_branch
      %27 = sbr.rel (0) target = $region13
    $region12: #{tpu_custom_call.1} parent=1 // pred_region
      _
    $region13: #{tpu_custom_call.1} parent=1 // pred_fallthru
      _
    // Predicated region
    $region14: #{tpu_custom_call.1} parent=1 // pred_check
      _
    $region15: #{tpu_custom_call.1} parent=1 // pred_check_branch
      %29 = sbr.rel (0) target = $region17
    $region16: #{tpu_custom_call.1} parent=1 // pred_region
      _
    $region17: #{tpu_custom_call.1} parent=1 // pred_fallthru
      _
    // Predicated region
    $region18: #{tpu_custom_call.1} parent=1 // pred_check
      _
    $region19: #{tpu_custom_call.1} parent=1 // pred_check_branch
      %31 = sbr.rel (0) target = $region21
    $region20: #{tpu_custom_call.1} parent=1 // pred_region
      _
    $region21: #{tpu_custom_call.1} parent=1 // pred_fallthru
      _
    // Predicated region
    $region22: #{tpu_custom_call.1} parent=1 // pred_check
      _
    $region23: #{tpu_custom_call.1} parent=1 // pred_check_branch
      %33 = sbr.rel (0) target = $region25
    $region24: #{tpu_custom_call.1} parent=1 // pred_region
      _
    $region25: #{tpu_custom_call.1} parent=1 // pred_fallthru
      _
    // Predicated region
    $region26: #{tpu_custom_call.1} parent=1 // pred_check
      _
    $region27: #{tpu_custom_call.1} parent=1 // pred_check_branch
      %35 = sbr.rel (0) target = $region29
    $region28: #{tpu_custom_call.1} parent=1 // pred_region
      _
    $region29: #{tpu_custom_call.1} parent=1 // pred_fallthru
      _
    // Predicated region
    $region30: #{tpu_custom_call.1} parent=1 // pred_check
      _
    $region31: #{tpu_custom_call.1} parent=1 // pred_check_branch
      %37 = sbr.rel (0) target = $region33
    $region32: #{tpu_custom_call.1} parent=1 // pred_region
      _
    $region33: #{tpu_custom_call.1} parent=1 // pred_fallthru
      _
    // Predicated region
    $region34: #{tpu_custom_call.1} parent=1 // pred_check
      _
    $region35: #{tpu_custom_call.1} parent=1 // pred_check_branch
      %39 = sbr.rel (0) target = $region37
    $region36: #{tpu_custom_call.1} parent=1 // pred_region
      _
    $region37: #{tpu_custom_call.1} parent=1 // pred_fallthru
      _
    // Predicated region
    $region38: #{tpu_custom_call.1} parent=1 // pred_check
      _
    $region39: #{tpu_custom_call.1} parent=1 // pred_check_branch
      %41 = sbr.rel (0) target = $region41
    $region40: #{tpu_custom_call.1} parent=1 // pred_region
      _
    $region41: #{tpu_custom_call.1} parent=1 // pred_fallthru
      _
    // Predicated region
    $region42: #{tpu_custom_call.1} parent=1 // pred_check
      _
    $region43: #{tpu_custom_call.1} parent=1 // pred_check_branch
      %43 = sbr.rel (0) target = $region45
    $region44: #{tpu_custom_call.1} parent=1 // pred_region
      _
    $region45: #{tpu_custom_call.1} parent=1 // pred_fallthru
      _
    // Predicated region
    $region46: #{tpu_custom_call.1} parent=1 // pred_check
      _
    $region47: #{tpu_custom_call.1} parent=1 // pred_check_branch
      %45 = sbr.rel (0) target = $region49
    $region48: #{tpu_custom_call.1} parent=1 // pred_region
      _
    $region49: #{tpu_custom_call.1} parent=1 // pred_fallthru
      _
    // Predicated region
    $region50: #{tpu_custom_call.1} parent=1 // pred_check
      _
    $region51: #{tpu_custom_call.1} parent=1 // pred_check_branch
      %47 = sbr.rel (0) target = $region53
    $region52: #{tpu_custom_call.1} parent=1 // pred_region
      _
    $region53: #{tpu_custom_call.1} parent=1 // pred_fallthru
      _
    // Predicated region
    $region54: #{tpu_custom_call.1} parent=1 // pred_check
      _
    $region55: #{tpu_custom_call.1} parent=1 // pred_check_branch
      %49 = sbr.rel (0) target = $region57
    $region56: #{tpu_custom_call.1} parent=1 // pred_region
      _
    $region57: #{tpu_custom_call.1} parent=1 // pred_fallthru
      _
    // Predicated region
    $region58: #{tpu_custom_call.1} parent=1 // pred_check
      _
    $region59: #{tpu_custom_call.1} parent=1 // pred_check_branch
      %51 = sbr.rel (0) target = $region61
    $region60: #{tpu_custom_call.1} parent=1 // pred_region
      _
    $region61: #{tpu_custom_call.1} parent=1 // pred_fallthru
      _
    // Predicated region
    $region62: #{tpu_custom_call.1} parent=1 // pred_check
      _
    $region63: #{tpu_custom_call.1} parent=1 // pred_check_branch
      %53 = sbr.rel (0) target = $region65
    $region64: #{tpu_custom_call.1} parent=1 // pred_region
      _
    $region65: #{tpu_custom_call.1} parent=1 // pred_fallthru
      _
    %v54 = vld [vmem:[%s0] sm:$0xff]
    %v55 = vld [vmem:[%s0 + $0x8] sm:$0xff]
    %v56 = vlaneseq
    %v57 = vshrl.u32 %v56, 7
    %v58 = vlaneseq
    %v59 = vand.u32 %v58, 127
    %vm60 = vcmp.le.s32.totalorder %v59, %v57
    %v61 = vld [vmem:[%s1] sm:$0x1]
    %v62 = vld [vmem:[%s2] sm:$0x1]
    %vm63 = vcmask 261120
    %v64 = vsel %vm63, %v54, 0.0
    %65 = vadd.xlane.f32.xlu0 %v64
    %v66 = vpop.xlane.xlu0 %65
    %v67 = vsel %vm63, %v55, 0.0
    %68 = vadd.xlane.f32.xlu0 %v67
    %v69 = vpop.xlane.xlu0 %68
    %v70 = vrcp.pop 32.0
    %v71 = vmul.f32 32.0, %v70
    %v72 = vsub.f32 1.0, %v71
    %v73 = vmul.f32 %v70, %v72
    %v74 = vadd.f32 %v70, %v73
    %vm75 = vweird.f32 %v70
    %v76 = vsel %vm75, %v70, %v74
    %v77 = vmul.f32 %v66, %v76
    %v78 = vmul.f32 %v69, %v76
    %v79 = vsub.f32 %v54, %v77
    %v80 = vsub.f32 %v55, %v78
    %v81 = vmul.f32 %v79, %v79
    %v82 = vmul.f32 %v80, %v80
    %v83 = vsel %vm63, %v81, 0.0
    %84 = vadd.xlane.f32.xlu0 %v83
    %v85 = vpop.xlane.xlu0 %84
    %v86 = vsel %vm63, %v82, 0.0
    %87 = vadd.xlane.f32.xlu0 %v86
    %v88 = vpop.xlane.xlu0 %87
    %v89 = vmul.f32 %v85, %v76
    %v90 = vmul.f32 %v88, %v76
    %v91 = vadd.f32 %v89, 1e-05
    %v92 = vadd.f32 %v90, 1e-05
    %v93 = vrsqrt.pop %v91
    %v94 = vmul.f32 %v93, %v91
    %v95 = vmul.f32 %v94, %v93
    %v96 = vmul.f32 0.5, %v95
    %v97 = vsub.f32 1.5, %v96
    %v98 = vmul.f32 %v93, %v97
    %vm99 = vweird.f32 %v91
    %vm100 = vweird.f32 %v93
    %vm101 = vmor %vm99, %vm100
    %v102 = vsel %vm101, %v93, %v98
    %v103 = vrsqrt.pop %v92
    %v104 = vmul.f32 %v103, %v92
    %v105 = vmul.f32 %v104, %v103
    %v106 = vmul.f32 0.5, %v105
    %v107 = vsub.f32 1.5, %v106
    %v108 = vmul.f32 %v103, %v107
    %vm109 = vweird.f32 %v92
    %vm110 = vweird.f32 %v103
    %vm111 = vmor %vm109, %vm110
    %v112 = vsel %vm111, %v103, %v108
    %v113 = vmul.f32 %v79, %v102
    %v114 = vmul.f32 %v80, %v112
    %v116 = vperm.slane %v61, 0
    %v118 = vmul.f32 %v113, %v116
    %v119 = vmul.f32 %v114, %v116
    %v121 = vperm.slane %v62, 0
    %v123 = vadd.f32 %v118, %v121
    %v124 = vadd.f32 %v119, %v121
    %v125 = vld [vmem:[%s3] sm:$0xff]
    %v126 = vld [vmem:[%s3 + $0x8] sm:$0xff]
    %v127 = vld [vmem:[%s3 + $0x10] sm:$0xff]
    %v128 = vld [vmem:[%s3 + $0x18] sm:$0xff]
    %v129 = vld [vmem:[%s4] sm:$0x1]
    %v131 = vperm.slane %v129, 0
    %v134 = vsel %vm63, %v123, 0
    %v137 = vsel %vm63, %v124, 0
    %139 = vmatpush.msra.mxu0 0.0
    %140 = vmatpush.msra.mxu0 0.0
    %141 = vmatpush.msra.mxu0 0.0
    %142 = vmatpush.msra.mxu0 0.0
    %143 = vmatpush.msra.mxu0 0.0
    %144 = vmatpush.msra.mxu0 0.0
    %145 = vmatpush.msra.mxu0 0.0
    %146 = vmatpush.msra.mxu0 0.0
    %147 = vmatpush.msra.mxu0 0.0
    %148 = vmatpush.msra.mxu0 0.0
    %149 = vmatpush.msra.mxu0 0.0
    %150 = vmatpush.msra.mxu0 0.0
    %151 = vmatpush.msra.mxu0 %v128
    %152 = vmatpush.msra.mxu0 %v127
    %153 = vmatpush.msra.mxu0 %v126
    %154 = vmatpush.msra.mxu0 %v125
    %155 = vmatmul.f32.gmra.mxu0 %v134
    %v156 = vpop.f32.mrf.mxu0
    %v157 = vadd.f32 %v131, %v156
    %158 = vmatmul.f32.gmra.mxu0 %v137
    %v159 = vpop.f32.mrf.mxu0
    %v160 = vadd.f32 %v131, %v159
    %161 = vdwg.mxu0
    %v162 = vmul.f32 %v157, 0.35355338
    %v163 = vmul.f32 %v160, 0.35355338
    %v164 = vld [vmem:[%s5] sm:$0xff]
    %v165 = vld [vmem:[%s5 + $0x8] sm:$0xff]
    %v166 = vld [vmem:[%s5 + $0x10] sm:$0xff]
    %v167 = vld [vmem:[%s5 + $0x18] sm:$0xff]
    %169 = vrot.lane.b32.xlu0 %v157, 96
    %v170 = vpop.permute.xlu0 %169
    %vm171 = vcmask 64512
    %v173 = vsel %vm171, %v162, 0
    %v175 = vsel %vm171, %v170, 0
    %177 = vmatpush.xpose.msra.mxu0 0.0
    %178 = vmatpush.xpose.msra.mxu0 0.0
    %179 = vmatpush.xpose.msra.mxu0 0.0
    %180 = vmatpush.xpose.msra.mxu0 0.0
    %181 = vmatpush.xpose.msra.mxu0 0.0
    %182 = vmatpush.xpose.msra.mxu0 0.0
    %183 = vmatpush.xpose.msra.mxu0 0.0
    %184 = vmatpush.xpose.msra.mxu0 0.0
    %185 = vmatpush.xpose.msra.mxu0 0.0
    %186 = vmatpush.xpose.msra.mxu0 0.0
    %187 = vmatpush.xpose.msra.mxu0 0.0
    %188 = vmatpush.xpose.msra.mxu0 0.0
    %189 = vmatpush.xpose.msra.mxu0 0.0
    %190 = vmatpush.xpose.msra.mxu0 0.0
    %191 = vmatpush.xpose.msra.mxu0 0.0
    %192 = vmatpush.xpose.msra.mxu0 %v175
    %193 = vmatmul.f32.gmra.mxu0 %v173
    %v194 = vpop.f32.mrf.mxu0
    %v195 = vadd.f32 0.0, %v194
    %196 = vdwg.mxu0
    %198 = vrot.lane.b32.xlu0 %v160, 96
    %v199 = vpop.permute.xlu0 %198
    %v201 = vsel %vm171, %v163, 0
    %v203 = vsel %vm171, %v199, 0
    %205 = vmatpush.xpose.msra.mxu0 0.0
    %206 = vmatpush.xpose.msra.mxu0 0.0
    %207 = vmatpush.xpose.msra.mxu0 0.0
    %208 = vmatpush.xpose.msra.mxu0 0.0
    %209 = vmatpush.xpose.msra.mxu0 0.0
    %210 = vmatpush.xpose.msra.mxu0 0.0
    %211 = vmatpush.xpose.msra.mxu0 0.0
    %212 = vmatpush.xpose.msra.mxu0 0.0
    %213 = vmatpush.xpose.msra.mxu0 0.0
    %214 = vmatpush.xpose.msra.mxu0 0.0
    %215 = vmatpush.xpose.msra.mxu0 0.0
    %216 = vmatpush.xpose.msra.mxu0 0.0
    %217 = vmatpush.xpose.msra.mxu0 0.0
    %218 = vmatpush.xpose.msra.mxu0 0.0
    %219 = vmatpush.xpose.msra.mxu0 0.0
    %220 = vmatpush.xpose.msra.mxu0 %v203
    %221 = vmatmul.f32.gmra.mxu0 %v201
    %v222 = vpop.f32.mrf.mxu0
    %v223 = vadd.f32 0.0, %v222
    %224 = vdwg.mxu0
    %v225 = vsel %vm60, 1, 0
    %vm226 = vcmp.eq.s32.totalorder %v225, 1
    %v227 = vsel %vm226, %v195, -1e+30
    %v228 = vsel %vm226, %v223, -1e+30
    %v229 = vsel %vm171, %v227, -inf
    %230 = vmax.xlane.f32.xlu0 %v229
    %v231 = vpop.xlane.xlu0 %230
    %v232 = vsel %vm171, %v228, -inf
    %233 = vmax.xlane.f32.xlu0 %v232
    %v234 = vpop.xlane.xlu0 %233
    %v235 = vsub.f32 %v227, %v231
    %v236 = vsub.f32 %v228, %v234
    %v237 = vmul.f32 %v235, 1.442695
    %v238 = vpow.pop %v237
    %v239 = vmul.f32 %v236, 1.442695
    %v240 = vpow.pop %v239
    %v241 = vsel %vm171, %v238, 0.0
    %242 = vadd.xlane.f32.xlu0 %v241
    %v243 = vpop.xlane.xlu0 %242
    %v244 = vsel %vm171, %v240, 0.0
    %245 = vadd.xlane.f32.xlu0 %v244
    %v246 = vpop.xlane.xlu0 %245
    %v247 = vrcp.pop %v243
    %v248 = vrcp.pop %v246
    %v249 = vmul.f32 %v238, %v247
    %v250 = vmul.f32 %v240, %v248
    %251 = vrot.lane.b32.xlu0 %v157, 64
    %v252 = vpop.permute.xlu0 %251
    %v255 = vsel %vm171, %v249, 0
    %257 = vmatpush.msra.mxu0 0.0
    %258 = vmatpush.msra.mxu0 0.0
    %259 = vmatpush.msra.mxu0 0.0
    %260 = vmatpush.msra.mxu0 0.0
    %261 = vmatpush.msra.mxu0 0.0
    %262 = vmatpush.msra.mxu0 0.0
    %263 = vmatpush.msra.mxu0 0.0
    %264 = vmatpush.msra.mxu0 0.0
    %265 = vmatpush.msra.mxu0 0.0
    %266 = vmatpush.msra.mxu0 0.0
    %267 = vmatpush.msra.mxu0 0.0
    %268 = vmatpush.msra.mxu0 0.0
    %269 = vmatpush.msra.mxu0 0.0
    %270 = vmatpush.msra.mxu0 0.0
    %271 = vmatpush.msra.mxu0 0.0
    %272 = vmatpush.msra.mxu0 %v252
    %273 = vmatmul.f32.gmra.mxu0 %v255
    %v274 = vpop.f32.mrf.mxu0
    %v275 = vadd.f32 0.0, %v274
    %276 = vdwg.mxu0
    %277 = vrot.lane.b32.xlu0 %v160, 64
    %v278 = vpop.permute.xlu0 %277
    %v281 = vsel %vm171, %v250, 0
    %283 = vmatpush.msra.mxu0 0.0
    %284 = vmatpush.msra.mxu0 0.0
    %285 = vmatpush.msra.mxu0 0.0
    %286 = vmatpush.msra.mxu0 0.0
    %287 = vmatpush.msra.mxu0 0.0
    %288 = vmatpush.msra.mxu0 0.0
    %289 = vmatpush.msra.mxu0 0.0
    %290 = vmatpush.msra.mxu0 0.0
    %291 = vmatpush.msra.mxu0 0.0
    %292 = vmatpush.msra.mxu0 0.0
    %293 = vmatpush.msra.mxu0 0.0
    %294 = vmatpush.msra.mxu0 0.0
    %295 = vmatpush.msra.mxu0 0.0
    %296 = vmatpush.msra.mxu0 0.0
    %297 = vmatpush.msra.mxu0 0.0
    %298 = vmatpush.msra.mxu0 %v278
    %299 = vmatmul.f32.gmra.mxu0 %v281
    %v300 = vpop.f32.mrf.mxu0
    %v301 = vadd.f32 0.0, %v300
    %302 = vdwg.mxu0
    %303 = vrot.lane.b32.xlu0 %v162, 120
    %v304 = vpop.permute.xlu0 %303
    %305 = vrot.lane.b32.xlu0 %v157, 88
    %v306 = vpop.permute.xlu0 %305
    %v307 = vsel %vm171, %v304, 0
    %v309 = vsel %vm171, %v306, 0
    %311 = vmatpush.xpose.msra.mxu0 0.0
    %312 = vmatpush.xpose.msra.mxu0 0.0
    %313 = vmatpush.xpose.msra.mxu0 0.0
    %314 = vmatpush.xpose.msra.mxu0 0.0
    %315 = vmatpush.xpose.msra.mxu0 0.0
    %316 = vmatpush.xpose.msra.mxu0 0.0
    %317 = vmatpush.xpose.msra.mxu0 0.0
    %318 = vmatpush.xpose.msra.mxu0 0.0
    %319 = vmatpush.xpose.msra.mxu0 0.0
    %320 = vmatpush.xpose.msra.mxu0 0.0
    %321 = vmatpush.xpose.msra.mxu0 0.0
    %322 = vmatpush.xpose.msra.mxu0 0.0
    %323 = vmatpush.xpose.msra.mxu0 0.0
    %324 = vmatpush.xpose.msra.mxu0 0.0
    %325 = vmatpush.xpose.msra.mxu0 0.0
    %326 = vmatpush.xpose.msra.mxu0 %v309
    %327 = vmatmul.f32.gmra.mxu0 %v307
    %v328 = vpop.f32.mrf.mxu0
    %v329 = vadd.f32 0.0, %v328
    %330 = vdwg.mxu0
    %331 = vrot.lane.b32.xlu0 %v163, 120
    %v332 = vpop.permute.xlu0 %331
    %333 = vrot.lane.b32.xlu0 %v160, 88
    %v334 = vpop.permute.xlu0 %333
    %v335 = vsel %vm171, %v332, 0
    %v337 = vsel %vm171, %v334, 0
    %339 = vmatpush.xpose.msra.mxu0 0.0
    %340 = vmatpush.xpose.msra.mxu0 0.0
    %341 = vmatpush.xpose.msra.mxu0 0.0
    %342 = vmatpush.xpose.msra.mxu0 0.0
    %343 = vmatpush.xpose.msra.mxu0 0.0
    %344 = vmatpush.xpose.msra.mxu0 0.0
    %345 = vmatpush.xpose.msra.mxu0 0.0
    %346 = vmatpush.xpose.msra.mxu0 0.0
    %347 = vmatpush.xpose.msra.mxu0 0.0
    %348 = vmatpush.xpose.msra.mxu0 0.0
    %349 = vmatpush.xpose.msra.mxu0 0.0
    %350 = vmatpush.xpose.msra.mxu0 0.0
    %351 = vmatpush.xpose.msra.mxu0 0.0
    %352 = vmatpush.xpose.msra.mxu0 0.0
    %353 = vmatpush.xpose.msra.mxu0 0.0
    %354 = vmatpush.xpose.msra.mxu0 %v337
    %355 = vmatmul.f32.gmra.mxu0 %v335
    %v356 = vpop.f32.mrf.mxu0
    %v357 = vadd.f32 0.0, %v356
    %358 = vdwg.mxu0
    %v359 = vsel %vm226, %v329, -1e+30
    %v360 = vsel %vm226, %v357, -1e+30
    %v361 = vsel %vm171, %v359, -inf
    %362 = vmax.xlane.f32.xlu0 %v361
    %v363 = vpop.xlane.xlu0 %362
    %v364 = vsel %vm171, %v360, -inf
    %365 = vmax.xlane.f32.xlu0 %v364
    %v366 = vpop.xlane.xlu0 %365
    %v367 = vsub.f32 %v359, %v363
    %v368 = vsub.f32 %v360, %v366
    %v369 = vmul.f32 %v367, 1.442695
    %v370 = vpow.pop %v369
    %v371 = vmul.f32 %v368, 1.442695
    %v372 = vpow.pop %v371
    %v373 = vsel %vm171, %v370, 0.0
    %374 = vadd.xlane.f32.xlu0 %v373
    %v375 = vpop.xlane.xlu0 %374
    %v376 = vsel %vm171, %v372, 0.0
    %377 = vadd.xlane.f32.xlu0 %v376
    %v378 = vpop.xlane.xlu0 %377
    %v379 = vrcp.pop %v375
    %v380 = vrcp.pop %v378
    %v381 = vmul.f32 %v370, %v379
    %v382 = vmul.f32 %v372, %v380
    %383 = vrot.lane.b32.xlu0 %v157, 56
    %v384 = vpop.permute.xlu0 %383
    %v387 = vsel %vm171, %v381, 0
    %389 = vmatpush.msra.mxu0 0.0
    %390 = vmatpush.msra.mxu0 0.0
    %391 = vmatpush.msra.mxu0 0.0
    %392 = vmatpush.msra.mxu0 0.0
    %393 = vmatpush.msra.mxu0 0.0
    %394 = vmatpush.msra.mxu0 0.0
    %395 = vmatpush.msra.mxu0 0.0
    %396 = vmatpush.msra.mxu0 0.0
    %397 = vmatpush.msra.mxu0 0.0
    %398 = vmatpush.msra.mxu0 0.0
    %399 = vmatpush.msra.mxu0 0.0
    %400 = vmatpush.msra.mxu0 0.0
    %401 = vmatpush.msra.mxu0 0.0
    %402 = vmatpush.msra.mxu0 0.0
    %403 = vmatpush.msra.mxu0 0.0
    %404 = vmatpush.msra.mxu0 %v384
    %405 = vmatmul.f32.gmra.mxu0 %v387
    %v406 = vpop.f32.mrf.mxu0
    %v407 = vadd.f32 0.0, %v406
    %408 = vdwg.mxu0
    %409 = vrot.lane.b32.xlu0 %v160, 56
    %v410 = vpop.permute.xlu0 %409
    %v413 = vsel %vm171, %v382, 0
    %415 = vmatpush.msra.mxu0 0.0
    %416 = vmatpush.msra.mxu0 0.0
    %417 = vmatpush.msra.mxu0 0.0
    %418 = vmatpush.msra.mxu0 0.0
    %419 = vmatpush.msra.mxu0 0.0
    %420 = vmatpush.msra.mxu0 0.0
    %421 = vmatpush.msra.mxu0 0.0
    %422 = vmatpush.msra.mxu0 0.0
    %423 = vmatpush.msra.mxu0 0.0
    %424 = vmatpush.msra.mxu0 0.0
    %425 = vmatpush.msra.mxu0 0.0
    %426 = vmatpush.msra.mxu0 0.0
    %427 = vmatpush.msra.mxu0 0.0
    %428 = vmatpush.msra.mxu0 0.0
    %429 = vmatpush.msra.mxu0 0.0
    %430 = vmatpush.msra.mxu0 %v410
    %431 = vmatmul.f32.gmra.mxu0 %v413
    %v432 = vpop.f32.mrf.mxu0
    %v433 = vadd.f32 0.0, %v432
    %434 = vdwg.mxu0
    %v436 = vsel %vm171, %v407, 0
    %v439 = vsel %vm171, %v433, 0
    %441 = vmatpush.msra.mxu0 0.0
    %442 = vmatpush.msra.mxu0 0.0
    %443 = vmatpush.msra.mxu0 0.0
    %444 = vmatpush.msra.mxu0 0.0
    %445 = vmatpush.msra.mxu0 0.0
    %446 = vmatpush.msra.mxu0 0.0
    %447 = vmatpush.msra.mxu0 0.0
    %448 = vmatpush.msra.mxu0 0.0
    %449 = vmatpush.msra.mxu0 0.0
    %450 = vmatpush.msra.mxu0 0.0
    %451 = vmatpush.msra.mxu0 0.0
    %452 = vmatpush.msra.mxu0 0.0
    %453 = vmatpush.msra.mxu0 0.0
    %454 = vmatpush.msra.mxu0 0.0
    %455 = vmatpush.msra.mxu0 0.0
    %456 = vmatpush.msra.mxu0 %v165
    %457 = vmatmul.f32.gmra.mxu0 %v436
    %v458 = vpop.f32.mrf.mxu0
    %v459 = vadd.f32 0.0, %v458
    %460 = vmatmul.f32.gmra.mxu0 %v439
    %v461 = vpop.f32.mrf.mxu0
    %v462 = vadd.f32 0.0, %v461
    %463 = vdwg.mxu0
    %v465 = vsel %vm171, %v275, 0
    %v468 = vsel %vm171, %v301, 0
    %470 = vmatpush.msra.mxu0 0.0
    %471 = vmatpush.msra.mxu0 0.0
    %472 = vmatpush.msra.mxu0 0.0
    %473 = vmatpush.msra.mxu0 0.0
    %474 = vmatpush.msra.mxu0 0.0
    %475 = vmatpush.msra.mxu0 0.0
    %476 = vmatpush.msra.mxu0 0.0
    %477 = vmatpush.msra.mxu0 0.0
    %478 = vmatpush.msra.mxu0 0.0
    %479 = vmatpush.msra.mxu0 0.0
    %480 = vmatpush.msra.mxu0 0.0
    %481 = vmatpush.msra.mxu0 0.0
    %482 = vmatpush.msra.mxu0 0.0
    %483 = vmatpush.msra.mxu0 0.0
    %484 = vmatpush.msra.mxu0 0.0
    %485 = vmatpush.msra.mxu0 %v164
    %486 = vmatmul.f32.gmra.mxu0 %v465
    %v487 = vpop.f32.mrf.mxu0
    %v488 = vadd.f32 %v459, %v487
    %489 = vmatmul.f32.gmra.mxu0 %v468
    %v490 = vpop.f32.mrf.mxu0
    %v491 = vadd.f32 %v462, %v490
    %492 = vdwg.mxu0
    %493 = vrot.lane.b32.xlu0 %v162, 112
    %v494 = vpop.permute.xlu0 %493
    %495 = vrot.lane.b32.xlu0 %v157, 80
    %v496 = vpop.permute.xlu0 %495
    %v497 = vsel %vm171, %v494, 0
    %v499 = vsel %vm171, %v496, 0
    %501 = vmatpush.xpose.msra.mxu0 0.0
    %502 = vmatpush.xpose.msra.mxu0 0.0
    %503 = vmatpush.xpose.msra.mxu0 0.0
    %504 = vmatpush.xpose.msra.mxu0 0.0
    %505 = vmatpush.xpose.msra.mxu0 0.0
    %506 = vmatpush.xpose.msra.mxu0 0.0
    %507 = vmatpush.xpose.msra.mxu0 0.0
    %508 = vmatpush.xpose.msra.mxu0 0.0
    %509 = vmatpush.xpose.msra.mxu0 0.0
    %510 = vmatpush.xpose.msra.mxu0 0.0
    %511 = vmatpush.xpose.msra.mxu0 0.0
    %512 = vmatpush.xpose.msra.mxu0 0.0
    %513 = vmatpush.xpose.msra.mxu0 0.0
    %514 = vmatpush.xpose.msra.mxu0 0.0
    %515 = vmatpush.xpose.msra.mxu0 0.0
    %516 = vmatpush.xpose.msra.mxu0 %v499
    %517 = vmatmul.f32.gmra.mxu0 %v497
    %v518 = vpop.f32.mrf.mxu0
    %v519 = vadd.f32 0.0, %v518
    %520 = vdwg.mxu0
    %521 = vrot.lane.b32.xlu0 %v163, 112
    %v522 = vpop.permute.xlu0 %521
    %523 = vrot.lane.b32.xlu0 %v160, 80
    %v524 = vpop.permute.xlu0 %523
    %v525 = vsel %vm171, %v522, 0
    %v527 = vsel %vm171, %v524, 0
    %529 = vmatpush.xpose.msra.mxu0 0.0
    %530 = vmatpush.xpose.msra.mxu0 0.0
    %531 = vmatpush.xpose.msra.mxu0 0.0
    %532 = vmatpush.xpose.msra.mxu0 0.0
    %533 = vmatpush.xpose.msra.mxu0 0.0
    %534 = vmatpush.xpose.msra.mxu0 0.0
    %535 = vmatpush.xpose.msra.mxu0 0.0
    %536 = vmatpush.xpose.msra.mxu0 0.0
    %537 = vmatpush.xpose.msra.mxu0 0.0
    %538 = vmatpush.xpose.msra.mxu0 0.0
    %539 = vmatpush.xpose.msra.mxu0 0.0
    %540 = vmatpush.xpose.msra.mxu0 0.0
    %541 = vmatpush.xpose.msra.mxu0 0.0
    %542 = vmatpush.xpose.msra.mxu0 0.0
    %543 = vmatpush.xpose.msra.mxu0 0.0
    %544 = vmatpush.xpose.msra.mxu0 %v527
    %545 = vmatmul.f32.gmra.mxu0 %v525
    %v546 = vpop.f32.mrf.mxu0
    %v547 = vadd.f32 0.0, %v546
    %548 = vdwg.mxu0
    %v549 = vsel %vm226, %v519, -1e+30
    %v550 = vsel %vm226, %v547, -1e+30
    %v551 = vsel %vm171, %v549, -inf
    %552 = vmax.xlane.f32.xlu0 %v551
    %v553 = vpop.xlane.xlu0 %552
    %v554 = vsel %vm171, %v550, -inf
    %555 = vmax.xlane.f32.xlu0 %v554
    %v556 = vpop.xlane.xlu0 %555
    %v557 = vsub.f32 %v549, %v553
    %v558 = vsub.f32 %v550, %v556
    %v559 = vmul.f32 %v557, 1.442695
    %v560 = vpow.pop %v559
    %v561 = vmul.f32 %v558, 1.442695
    %v562 = vpow.pop %v561
    %v563 = vsel %vm171, %v560, 0.0
    %564 = vadd.xlane.f32.xlu0 %v563
    %v565 = vpop.xlane.xlu0 %564
    %v566 = vsel %vm171, %v562, 0.0
    %567 = vadd.xlane.f32.xlu0 %v566
    %v568 = vpop.xlane.xlu0 %567
    %v569 = vrcp.pop %v565
    %v570 = vrcp.pop %v568
    %v571 = vmul.f32 %v560, %v569
    %v572 = vmul.f32 %v562, %v570
    %573 = vrot.lane.b32.xlu0 %v157, 48
    %v574 = vpop.permute.xlu0 %573
    %v577 = vsel %vm171, %v571, 0
    %579 = vmatpush.msra.mxu0 0.0
    %580 = vmatpush.msra.mxu0 0.0
    %581 = vmatpush.msra.mxu0 0.0
    %582 = vmatpush.msra.mxu0 0.0
    %583 = vmatpush.msra.mxu0 0.0
    %584 = vmatpush.msra.mxu0 0.0
    %585 = vmatpush.msra.mxu0 0.0
    %586 = vmatpush.msra.mxu0 0.0
    %587 = vmatpush.msra.mxu0 0.0
    %588 = vmatpush.msra.mxu0 0.0
    %589 = vmatpush.msra.mxu0 0.0
    %590 = vmatpush.msra.mxu0 0.0
    %591 = vmatpush.msra.mxu0 0.0
    %592 = vmatpush.msra.mxu0 0.0
    %593 = vmatpush.msra.mxu0 0.0
    %594 = vmatpush.msra.mxu0 %v574
    %595 = vmatmul.f32.gmra.mxu0 %v577
    %v596 = vpop.f32.mrf.mxu0
    %v597 = vadd.f32 0.0, %v596
    %598 = vdwg.mxu0
    %599 = vrot.lane.b32.xlu0 %v160, 48
    %v600 = vpop.permute.xlu0 %599
    %v603 = vsel %vm171, %v572, 0
    %605 = vmatpush.msra.mxu0 0.0
    %606 = vmatpush.msra.mxu0 0.0
    %607 = vmatpush.msra.mxu0 0.0
    %608 = vmatpush.msra.mxu0 0.0
    %609 = vmatpush.msra.mxu0 0.0
    %610 = vmatpush.msra.mxu0 0.0
    %611 = vmatpush.msra.mxu0 0.0
    %612 = vmatpush.msra.mxu0 0.0
    %613 = vmatpush.msra.mxu0 0.0
    %614 = vmatpush.msra.mxu0 0.0
    %615 = vmatpush.msra.mxu0 0.0
    %616 = vmatpush.msra.mxu0 0.0
    %617 = vmatpush.msra.mxu0 0.0
    %618 = vmatpush.msra.mxu0 0.0
    %619 = vmatpush.msra.mxu0 0.0
    %620 = vmatpush.msra.mxu0 %v600
    %621 = vmatmul.f32.gmra.mxu0 %v603
    %v622 = vpop.f32.mrf.mxu0
    %v623 = vadd.f32 0.0, %v622
    %624 = vdwg.mxu0
    %v626 = vsel %vm171, %v597, 0
    %v629 = vsel %vm171, %v623, 0
    %631 = vmatpush.msra.mxu0 0.0
    %632 = vmatpush.msra.mxu0 0.0
    %633 = vmatpush.msra.mxu0 0.0
    %634 = vmatpush.msra.mxu0 0.0
    %635 = vmatpush.msra.mxu0 0.0
    %636 = vmatpush.msra.mxu0 0.0
    %637 = vmatpush.msra.mxu0 0.0
    %638 = vmatpush.msra.mxu0 0.0
    %639 = vmatpush.msra.mxu0 0.0
    %640 = vmatpush.msra.mxu0 0.0
    %641 = vmatpush.msra.mxu0 0.0
    %642 = vmatpush.msra.mxu0 0.0
    %643 = vmatpush.msra.mxu0 0.0
    %644 = vmatpush.msra.mxu0 0.0
    %645 = vmatpush.msra.mxu0 0.0
    %646 = vmatpush.msra.mxu0 %v166
    %647 = vmatmul.f32.gmra.mxu0 %v626
    %v648 = vpop.f32.mrf.mxu0
    %v649 = vadd.f32 0.0, %v648
    %650 = vmatmul.f32.gmra.mxu0 %v629
    %v651 = vpop.f32.mrf.mxu0
    %v652 = vadd.f32 0.0, %v651
    %653 = vdwg.mxu0
    %v654 = vadd.f32 %v488, %v649
    %v655 = vadd.f32 %v491, %v652
    %656 = vrot.lane.b32.xlu0 %v162, 104
    %v657 = vpop.permute.xlu0 %656
    %658 = vrot.lane.b32.xlu0 %v157, 72
    %v659 = vpop.permute.xlu0 %658
    %v660 = vsel %vm171, %v657, 0
    %v662 = vsel %vm171, %v659, 0
    %664 = vmatpush.xpose.msra.mxu0 0.0
    %665 = vmatpush.xpose.msra.mxu0 0.0
    %666 = vmatpush.xpose.msra.mxu0 0.0
    %667 = vmatpush.xpose.msra.mxu0 0.0
    %668 = vmatpush.xpose.msra.mxu0 0.0
    %669 = vmatpush.xpose.msra.mxu0 0.0
    %670 = vmatpush.xpose.msra.mxu0 0.0
    %671 = vmatpush.xpose.msra.mxu0 0.0
    %672 = vmatpush.xpose.msra.mxu0 0.0
    %673 = vmatpush.xpose.msra.mxu0 0.0
    %674 = vmatpush.xpose.msra.mxu0 0.0
    %675 = vmatpush.xpose.msra.mxu0 0.0
    %676 = vmatpush.xpose.msra.mxu0 0.0
    %677 = vmatpush.xpose.msra.mxu0 0.0
    %678 = vmatpush.xpose.msra.mxu0 0.0
    %679 = vmatpush.xpose.msra.mxu0 %v662
    %680 = vmatmul.f32.gmra.mxu0 %v660
    %v681 = vpop.f32.mrf.mxu0
    %v682 = vadd.f32 0.0, %v681
    %683 = vdwg.mxu0
    %684 = vrot.lane.b32.xlu0 %v163, 104
    %v685 = vpop.permute.xlu0 %684
    %686 = vrot.lane.b32.xlu0 %v160, 72
    %v687 = vpop.permute.xlu0 %686
    %v688 = vsel %vm171, %v685, 0
    %v690 = vsel %vm171, %v687, 0
    %692 = vmatpush.xpose.msra.mxu0 0.0
    %693 = vmatpush.xpose.msra.mxu0 0.0
    %694 = vmatpush.xpose.msra.mxu0 0.0
    %695 = vmatpush.xpose.msra.mxu0 0.0
    %696 = vmatpush.xpose.msra.mxu0 0.0
    %697 = vmatpush.xpose.msra.mxu0 0.0
    %698 = vmatpush.xpose.msra.mxu0 0.0
    %699 = vmatpush.xpose.msra.mxu0 0.0
    %700 = vmatpush.xpose.msra.mxu0 0.0
    %701 = vmatpush.xpose.msra.mxu0 0.0
    %702 = vmatpush.xpose.msra.mxu0 0.0
    %703 = vmatpush.xpose.msra.mxu0 0.0
    %704 = vmatpush.xpose.msra.mxu0 0.0
    %705 = vmatpush.xpose.msra.mxu0 0.0
    %706 = vmatpush.xpose.msra.mxu0 0.0
    %707 = vmatpush.xpose.msra.mxu0 %v690
    %708 = vmatmul.f32.gmra.mxu0 %v688
    %v709 = vpop.f32.mrf.mxu0
    %v710 = vadd.f32 0.0, %v709
    %711 = vdwg.mxu0
    %v712 = vsel %vm226, %v682, -1e+30
    %v713 = vsel %vm226, %v710, -1e+30
    %v714 = vsel %vm171, %v712, -inf
    %715 = vmax.xlane.f32.xlu0 %v714
    %v716 = vpop.xlane.xlu0 %715
    %v717 = vsel %vm171, %v713, -inf
    %718 = vmax.xlane.f32.xlu0 %v717
    %v719 = vpop.xlane.xlu0 %718
    %v720 = vsub.f32 %v712, %v716
    %v721 = vsub.f32 %v713, %v719
    %v722 = vmul.f32 %v720, 1.442695
    %v723 = vpow.pop %v722
    %v724 = vmul.f32 %v721, 1.442695
    %v725 = vpow.pop %v724
    %v726 = vsel %vm171, %v723, 0.0
    %727 = vadd.xlane.f32.xlu0 %v726
    %v728 = vpop.xlane.xlu0 %727
    %v729 = vsel %vm171, %v725, 0.0
    %730 = vadd.xlane.f32.xlu0 %v729
    %v731 = vpop.xlane.xlu0 %730
    %v732 = vrcp.pop %v728
    %v733 = vrcp.pop %v731
    %v734 = vmul.f32 %v723, %v732
    %v735 = vmul.f32 %v725, %v733
    %736 = vrot.lane.b32.xlu0 %v157, 40
    %v737 = vpop.permute.xlu0 %736
    %v740 = vsel %vm171, %v734, 0
    %742 = vmatpush.msra.mxu0 0.0
    %743 = vmatpush.msra.mxu0 0.0
    %744 = vmatpush.msra.mxu0 0.0
    %745 = vmatpush.msra.mxu0 0.0
    %746 = vmatpush.msra.mxu0 0.0
    %747 = vmatpush.msra.mxu0 0.0
    %748 = vmatpush.msra.mxu0 0.0
    %749 = vmatpush.msra.mxu0 0.0
    %750 = vmatpush.msra.mxu0 0.0
    %751 = vmatpush.msra.mxu0 0.0
    %752 = vmatpush.msra.mxu0 0.0
    %753 = vmatpush.msra.mxu0 0.0
    %754 = vmatpush.msra.mxu0 0.0
    %755 = vmatpush.msra.mxu0 0.0
    %756 = vmatpush.msra.mxu0 0.0
    %757 = vmatpush.msra.mxu0 %v737
    %758 = vmatmul.f32.gmra.mxu0 %v740
    %v759 = vpop.f32.mrf.mxu0
    %v760 = vadd.f32 0.0, %v759
    %761 = vdwg.mxu0
    %762 = vrot.lane.b32.xlu0 %v160, 40
    %v763 = vpop.permute.xlu0 %762
    %v766 = vsel %vm171, %v735, 0
    %768 = vmatpush.msra.mxu0 0.0
    %769 = vmatpush.msra.mxu0 0.0
    %770 = vmatpush.msra.mxu0 0.0
    %771 = vmatpush.msra.mxu0 0.0
    %772 = vmatpush.msra.mxu0 0.0
    %773 = vmatpush.msra.mxu0 0.0
    %774 = vmatpush.msra.mxu0 0.0
    %775 = vmatpush.msra.mxu0 0.0
    %776 = vmatpush.msra.mxu0 0.0
    %777 = vmatpush.msra.mxu0 0.0
    %778 = vmatpush.msra.mxu0 0.0
    %779 = vmatpush.msra.mxu0 0.0
    %780 = vmatpush.msra.mxu0 0.0
    %781 = vmatpush.msra.mxu0 0.0
    %782 = vmatpush.msra.mxu0 0.0
    %783 = vmatpush.msra.mxu0 %v763
    %784 = vmatmul.f32.gmra.mxu0 %v766
    %v785 = vpop.f32.mrf.mxu0
    %v786 = vadd.f32 0.0, %v785
    %787 = vdwg.mxu0
    %v789 = vsel %vm171, %v760, 0
    %v792 = vsel %vm171, %v786, 0
    %794 = vmatpush.msra.mxu0 0.0
    %795 = vmatpush.msra.mxu0 0.0
    %796 = vmatpush.msra.mxu0 0.0
    %797 = vmatpush.msra.mxu0 0.0
    %798 = vmatpush.msra.mxu0 0.0
    %799 = vmatpush.msra.mxu0 0.0
    %800 = vmatpush.msra.mxu0 0.0
    %801 = vmatpush.msra.mxu0 0.0
    %802 = vmatpush.msra.mxu0 0.0
    %803 = vmatpush.msra.mxu0 0.0
    %804 = vmatpush.msra.mxu0 0.0
    %805 = vmatpush.msra.mxu0 0.0
    %806 = vmatpush.msra.mxu0 0.0
    %807 = vmatpush.msra.mxu0 0.0
    %808 = vmatpush.msra.mxu0 0.0
    %809 = vmatpush.msra.mxu0 %v167
    %810 = vmatmul.f32.gmra.mxu0 %v789
    %v811 = vpop.f32.mrf.mxu0
    %v812 = vadd.f32 0.0, %v811
    %813 = vmatmul.f32.gmra.mxu0 %v792
    %v814 = vpop.f32.mrf.mxu0
    %v815 = vadd.f32 0.0, %v814
    %816 = vdwg.mxu0
    %v817 = vadd.f32 %v654, %v812
    %v818 = vadd.f32 %v655, %v815
    %v819 = vadd.f32 %v54, %v817
    %v820 = vadd.f32 %v55, %v818
    %v821 = vld [vmem:[%s6] sm:$0x1]
    %v823 = vperm.slane %v821, 0
    %v825 = vadd.f32 %v819, %v823
    %v826 = vadd.f32 %v820, %v823
    %v827 = vld [vmem:[%s7] sm:$0x1]
    %v828 = vld [vmem:[%s8] sm:$0x1]
    %v829 = vsel %vm63, %v825, 0.0
    %830 = vadd.xlane.f32.xlu0 %v829
    %v831 = vpop.xlane.xlu0 %830
    %v832 = vsel %vm63, %v826, 0.0
    %833 = vadd.xlane.f32.xlu0 %v832
    %v834 = vpop.xlane.xlu0 %833
    %v835 = vmul.f32 %v831, %v76
    %v836 = vmul.f32 %v834, %v76
    %v837 = vsub.f32 %v825, %v835
    %v838 = vsub.f32 %v826, %v836
    %v839 = vmul.f32 %v837, %v837
    %v840 = vmul.f32 %v838, %v838
    %v841 = vsel %vm63, %v839, 0.0
    %842 = vadd.xlane.f32.xlu0 %v841
    %v843 = vpop.xlane.xlu0 %842
    %v844 = vsel %vm63, %v840, 0.0
    %845 = vadd.xlane.f32.xlu0 %v844
    %v846 = vpop.xlane.xlu0 %845
    %v847 = vmul.f32 %v843, %v76
    %v848 = vmul.f32 %v846, %v76
    %v849 = vadd.f32 %v847, 1e-05
    %v850 = vadd.f32 %v848, 1e-05
    %v851 = vrsqrt.pop %v849
    %v852 = vmul.f32 %v851, %v849
    %v853 = vmul.f32 %v852, %v851
    %v854 = vmul.f32 0.5, %v853
    %v855 = vsub.f32 1.5, %v854
    %v856 = vmul.f32 %v851, %v855
    %vm857 = vweird.f32 %v849
    %vm858 = vweird.f32 %v851
    %vm859 = vmor %vm857, %vm858
    %v860 = vsel %vm859, %v851, %v856
    %v861 = vrsqrt.pop %v850
    %v862 = vmul.f32 %v861, %v850
    %v863 = vmul.f32 %v862, %v861
    %v864 = vmul.f32 0.5, %v863
    %v865 = vsub.f32 1.5, %v864
    %v866 = vmul.f32 %v861, %v865
    %vm867 = vweird.f32 %v850
    %vm868 = vweird.f32 %v861
    %vm869 = vmor %vm867, %vm868
    %v870 = vsel %vm869, %v861, %v866
    %v871 = vmul.f32 %v837, %v860
    %v872 = vmul.f32 %v838, %v870
    %v874 = vperm.slane %v827, 0
    %v876 = vmul.f32 %v871, %v874
    %v877 = vmul.f32 %v872, %v874
    %v879 = vperm.slane %v828, 0
    %v881 = vadd.f32 %v876, %v879
    %v882 = vadd.f32 %v877, %v879
    %v883 = vld [vmem:[%s9] sm:$0xff]
    %v884 = vld [vmem:[%s9 + $0x8] sm:$0xff]
    %v885 = vld [vmem:[%s9 + $0x10] sm:$0xff]
    %v886 = vld [vmem:[%s9 + $0x18] sm:$0xff]
    %v887 = vld [vmem:[%s10] sm:$0x1]
    %v889 = vperm.slane %v887, 0
    %v892 = vsel %vm63, %v881, 0
    %v895 = vsel %vm63, %v882, 0
    %897 = vmatpush.msra.mxu0 0.0
    %898 = vmatpush.msra.mxu0 0.0
    %899 = vmatpush.msra.mxu0 0.0
    %900 = vmatpush.msra.mxu0 0.0
    %901 = vmatpush.msra.mxu0 0.0
    %902 = vmatpush.msra.mxu0 0.0
    %903 = vmatpush.msra.mxu0 0.0
    %904 = vmatpush.msra.mxu0 0.0
    %905 = vmatpush.msra.mxu0 0.0
    %906 = vmatpush.msra.mxu0 0.0
    %907 = vmatpush.msra.mxu0 0.0
    %908 = vmatpush.msra.mxu0 0.0
    %909 = vmatpush.msra.mxu0 %v886
    %910 = vmatpush.msra.mxu0 %v885
    %911 = vmatpush.msra.mxu0 %v884
    %912 = vmatpush.msra.mxu0 %v883
    %913 = vmatmul.f32.gmra.mxu0 %v892
    %v914 = vpop.f32.mrf.mxu0
    %v915 = vadd.f32 %v889, %v914
    %916 = vmatmul.f32.gmra.mxu0 %v895
    %v917 = vpop.f32.mrf.mxu0
    %v918 = vadd.f32 %v889, %v917
    %919 = vdwg.mxu0
    %v920 = vmul.f32 %v915, 0.5
    %v921 = vmul.f32 %v918, 0.5
    %v922 = vmul.f32 %v915, 0.044715
    %v923 = vmul.f32 %v918, 0.044715
    %v924 = vmul.f32 %v922, %v915
    %v925 = vmul.f32 %v923, %v918
    %v926 = vmul.f32 %v924, %v915
    %v927 = vmul.f32 %v925, %v918
    %v928 = vadd.f32 %v915, %v926
    %v929 = vadd.f32 %v918, %v927
    %v930 = vmul.f32 %v928, 0.7978846
    %v931 = vmul.f32 %v929, 0.7978846
    %v932 = vtanh.pop %v930
    %v933 = vtanh.pop %v931
    %v934 = vadd.f32 %v932, 1.0
    %v935 = vadd.f32 %v933, 1.0
    %v936 = vmul.f32 %v920, %v934
    %v937 = vmul.f32 %v921, %v935
    %v938 = vld [vmem:[%s11] sm:$0xff]
    %v939 = vld [vmem:[%s11 + $0x8] sm:$0xff]
    %v940 = vld [vmem:[%s11 + $0x10] sm:$0xff]
    %v941 = vld [vmem:[%s11 + $0x18] sm:$0xff]
    %v942 = vld [vmem:[%s11 + $0x20] sm:$0xff]
    %v943 = vld [vmem:[%s11 + $0x28] sm:$0xff]
    %v944 = vld [vmem:[%s11 + $0x30] sm:$0xff]
    %v945 = vld [vmem:[%s11 + $0x38] sm:$0xff]
    %v946 = vld [vmem:[%s11 + $0x40] sm:$0xff]
    %v947 = vld [vmem:[%s11 + $0x48] sm:$0xff]
    %v948 = vld [vmem:[%s11 + $0x50] sm:$0xff]
    %v949 = vld [vmem:[%s11 + $0x58] sm:$0xff]
    %v950 = vld [vmem:[%s11 + $0x60] sm:$0xff]
    %v951 = vld [vmem:[%s11 + $0x68] sm:$0xff]
    %v952 = vld [vmem:[%s11 + $0x70] sm:$0xff]
    %v953 = vld [vmem:[%s11 + $0x78] sm:$0xff]
    %954 = vmatpush.msra.mxu0 %v953
    %955 = vmatpush.msra.mxu0 %v952
    %956 = vmatpush.msra.mxu0 %v951
    %957 = vmatpush.msra.mxu0 %v950
    %958 = vmatpush.msra.mxu0 %v949
    %959 = vmatpush.msra.mxu0 %v948
    %960 = vmatpush.msra.mxu0 %v947
    %961 = vmatpush.msra.mxu0 %v946
    %962 = vmatpush.msra.mxu0 %v945
    %963 = vmatpush.msra.mxu0 %v944
    %964 = vmatpush.msra.mxu0 %v943
    %965 = vmatpush.msra.mxu0 %v942
    %966 = vmatpush.msra.mxu0 %v941
    %967 = vmatpush.msra.mxu0 %v940
    %968 = vmatpush.msra.mxu0 %v939
    %969 = vmatpush.msra.mxu0 %v938
    %970 = vmatmul.f32.gmra.mxu0 %v936
    %v971 = vpop.f32.mrf.mxu0
    %v972 = vadd.f32 0.0, %v971
    %973 = vmatmul.f32.gmra.mxu0 %v937
    %v974 = vpop.f32.mrf.mxu0
    %v975 = vadd.f32 0.0, %v974
    %976 = vdwg.mxu0
    %v977 = vadd.f32 %v825, %v972
    %v978 = vadd.f32 %v826, %v975
    %v979 = vld [vmem:[%s12] sm:$0x1]
    %v981 = vperm.slane %v979, 0
    %v983 = vadd.f32 %v977, %v981
    %v984 = vadd.f32 %v978, %v981
    %s985 = scalar_lea.vmem %s1, 1
    %v986 = vld [vmem:[%s985] sm:$0x1]
    %s987 = scalar_lea.vmem %s2, 1
    %v988 = vld [vmem:[%s987] sm:$0x1]
    %v989 = vsel %vm63, %v983, 0.0
    %990 = vadd.xlane.f32.xlu0 %v989
    %v991 = vpop.xlane.xlu0 %990
    %v992 = vsel %vm63, %v984, 0.0
    %993 = vadd.xlane.f32.xlu0 %v992
    %v994 = vpop.xlane.xlu0 %993
    %v995 = vmul.f32 %v991, %v76
    %v996 = vmul.f32 %v994, %v76
    %v997 = vsub.f32 %v983, %v995
    %v998 = vsub.f32 %v984, %v996
    %v999 = vmul.f32 %v997, %v997
    %v1000 = vmul.f32 %v998, %v998
    %v1001 = vsel %vm63, %v999, 0.0
    %1002 = vadd.xlane.f32.xlu0 %v1001
    %v1003 = vpop.xlane.xlu0 %1002
    %v1004 = vsel %vm63, %v1000, 0.0
    %1005 = vadd.xlane.f32.xlu0 %v1004
    %v1006 = vpop.xlane.xlu0 %1005
    %v1007 = vmul.f32 %v1003, %v76
    %v1008 = vmul.f32 %v1006, %v76
    %v1009 = vadd.f32 %v1007, 1e-05
    %v1010 = vadd.f32 %v1008, 1e-05
    %v1011 = vrsqrt.pop %v1009
    %v1012 = vmul.f32 %v1011, %v1009
    %v1013 = vmul.f32 %v1012, %v1011
    %v1014 = vmul.f32 0.5, %v1013
    %v1015 = vsub.f32 1.5, %v1014
    %v1016 = vmul.f32 %v1011, %v1015
    %vm1017 = vweird.f32 %v1009
    %vm1018 = vweird.f32 %v1011
    %vm1019 = vmor %vm1017, %vm1018
    %v1020 = vsel %vm1019, %v1011, %v1016
    %v1021 = vrsqrt.pop %v1010
    %v1022 = vmul.f32 %v1021, %v1010
    %v1023 = vmul.f32 %v1022, %v1021
    %v1024 = vmul.f32 0.5, %v1023
    %v1025 = vsub.f32 1.5, %v1024
    %v1026 = vmul.f32 %v1021, %v1025
    %vm1027 = vweird.f32 %v1010
    %vm1028 = vweird.f32 %v1021
    %vm1029 = vmor %vm1027, %vm1028
    %v1030 = vsel %vm1029, %v1021, %v1026
    %v1031 = vmul.f32 %v997, %v1020
    %v1032 = vmul.f32 %v998, %v1030
    %v1034 = vperm.slane %v986, 0
    %v1036 = vmul.f32 %v1031, %v1034
    %v1037 = vmul.f32 %v1032, %v1034
    %v1039 = vperm.slane %v988, 0
    %v1041 = vadd.f32 %v1036, %v1039
    %v1042 = vadd.f32 %v1037, %v1039
    %s1043 = scalar_lea.vmem %s3, 32
    %v1044 = vld [vmem:[%s1043] sm:$0xff]
    %v1045 = vld [vmem:[%s1043 + $0x8] sm:$0xff]
    %v1046 = vld [vmem:[%s1043 + $0x10] sm:$0xff]
    %v1047 = vld [vmem:[%s1043 + $0x18] sm:$0xff]
    %s1048 = scalar_lea.vmem %s4, 1
    %v1049 = vld [vmem:[%s1048] sm:$0x1]
    %v1051 = vperm.slane %v1049, 0
    %v1054 = vsel %vm63, %v1041, 0
    %v1057 = vsel %vm63, %v1042, 0
    %1059 = vmatpush.msra.mxu0 0.0
    %1060 = vmatpush.msra.mxu0 0.0
    %1061 = vmatpush.msra.mxu0 0.0
    %1062 = vmatpush.msra.mxu0 0.0
    %1063 = vmatpush.msra.mxu0 0.0
    %1064 = vmatpush.msra.mxu0 0.0
    %1065 = vmatpush.msra.mxu0 0.0
    %1066 = vmatpush.msra.mxu0 0.0
    %1067 = vmatpush.msra.mxu0 0.0
    %1068 = vmatpush.msra.mxu0 0.0
    %1069 = vmatpush.msra.mxu0 0.0
    %1070 = vmatpush.msra.mxu0 0.0
    %1071 = vmatpush.msra.mxu0 %v1047
    %1072 = vmatpush.msra.mxu0 %v1046
    %1073 = vmatpush.msra.mxu0 %v1045
    %1074 = vmatpush.msra.mxu0 %v1044
    %1075 = vmatmul.f32.gmra.mxu0 %v1054
    %v1076 = vpop.f32.mrf.mxu0
    %v1077 = vadd.f32 %v1051, %v1076
    %1078 = vmatmul.f32.gmra.mxu0 %v1057
    %v1079 = vpop.f32.mrf.mxu0
    %v1080 = vadd.f32 %v1051, %v1079
    %1081 = vdwg.mxu0
    %v1082 = vmul.f32 %v1077, 0.35355338
    %v1083 = vmul.f32 %v1080, 0.35355338
    %s1084 = scalar_lea.vmem %s5, 32
    %v1085 = vld [vmem:[%s1084] sm:$0xff]
    %v1086 = vld [vmem:[%s1084 + $0x8] sm:$0xff]
    %v1087 = vld [vmem:[%s1084 + $0x10] sm:$0xff]
    %v1088 = vld [vmem:[%s1084 + $0x18] sm:$0xff]
    %1090 = vrot.lane.b32.xlu0 %v1077, 96
    %v1091 = vpop.permute.xlu0 %1090
    %v1093 = vsel %vm171, %v1082, 0
    %v1095 = vsel %vm171, %v1091, 0
    %1097 = vmatpush.xpose.msra.mxu0 0.0
    %1098 = vmatpush.xpose.msra.mxu0 0.0
    %1099 = vmatpush.xpose.msra.mxu0 0.0
    %1100 = vmatpush.xpose.msra.mxu0 0.0
    %1101 = vmatpush.xpose.msra.mxu0 0.0
    %1102 = vmatpush.xpose.msra.mxu0 0.0
    %1103 = vmatpush.xpose.msra.mxu0 0.0
    %1104 = vmatpush.xpose.msra.mxu0 0.0
    %1105 = vmatpush.xpose.msra.mxu0 0.0
    %1106 = vmatpush.xpose.msra.mxu0 0.0
    %1107 = vmatpush.xpose.msra.mxu0 0.0
    %1108 = vmatpush.xpose.msra.mxu0 0.0
    %1109 = vmatpush.xpose.msra.mxu0 0.0
    %1110 = vmatpush.xpose.msra.mxu0 0.0
    %1111 = vmatpush.xpose.msra.mxu0 0.0
    %1112 = vmatpush.xpose.msra.mxu0 %v1095
    %1113 = vmatmul.f32.gmra.mxu0 %v1093
    %v1114 = vpop.f32.mrf.mxu0
    %v1115 = vadd.f32 0.0, %v1114
    %1116 = vdwg.mxu0
    %1118 = vrot.lane.b32.xlu0 %v1080, 96
    %v1119 = vpop.permute.xlu0 %1118
    %v1121 = vsel %vm171, %v1083, 0
    %v1123 = vsel %vm171, %v1119, 0
    %1125 = vmatpush.xpose.msra.mxu0 0.0
    %1126 = vmatpush.xpose.msra.mxu0 0.0
    %1127 = vmatpush.xpose.msra.mxu0 0.0
    %1128 = vmatpush.xpose.msra.mxu0 0.0
    %1129 = vmatpush.xpose.msra.mxu0 0.0
    %1130 = vmatpush.xpose.msra.mxu0 0.0
    %1131 = vmatpush.xpose.msra.mxu0 0.0
    %1132 = vmatpush.xpose.msra.mxu0 0.0
    %1133 = vmatpush.xpose.msra.mxu0 0.0
    %1134 = vmatpush.xpose.msra.mxu0 0.0
    %1135 = vmatpush.xpose.msra.mxu0 0.0
    %1136 = vmatpush.xpose.msra.mxu0 0.0
    %1137 = vmatpush.xpose.msra.mxu0 0.0
    %1138 = vmatpush.xpose.msra.mxu0 0.0
    %1139 = vmatpush.xpose.msra.mxu0 0.0
    %1140 = vmatpush.xpose.msra.mxu0 %v1123
    %1141 = vmatmul.f32.gmra.mxu0 %v1121
    %v1142 = vpop.f32.mrf.mxu0
    %v1143 = vadd.f32 0.0, %v1142
    %1144 = vdwg.mxu0
    %v1145 = vsel %vm226, %v1115, -1e+30
    %v1146 = vsel %vm226, %v1143, -1e+30
    %v1147 = vsel %vm171, %v1145, -inf
    %1148 = vmax.xlane.f32.xlu0 %v1147
    %v1149 = vpop.xlane.xlu0 %1148
    %v1150 = vsel %vm171, %v1146, -inf
    %1151 = vmax.xlane.f32.xlu0 %v1150
    %v1152 = vpop.xlane.xlu0 %1151
    %v1153 = vsub.f32 %v1145, %v1149
    %v1154 = vsub.f32 %v1146, %v1152
    %v1155 = vmul.f32 %v1153, 1.442695
    %v1156 = vpow.pop %v1155
    %v1157 = vmul.f32 %v1154, 1.442695
    %v1158 = vpow.pop %v1157
    %v1159 = vsel %vm171, %v1156, 0.0
    %1160 = vadd.xlane.f32.xlu0 %v1159
    %v1161 = vpop.xlane.xlu0 %1160
    %v1162 = vsel %vm171, %v1158, 0.0
    %1163 = vadd.xlane.f32.xlu0 %v1162
    %v1164 = vpop.xlane.xlu0 %1163
    %v1165 = vrcp.pop %v1161
    %v1166 = vrcp.pop %v1164
    %v1167 = vmul.f32 %v1156, %v1165
    %v1168 = vmul.f32 %v1158, %v1166
    %1169 = vrot.lane.b32.xlu0 %v1077, 64
    %v1170 = vpop.permute.xlu0 %1169
    %v1173 = vsel %vm171, %v1167, 0
    %1175 = vmatpush.msra.mxu0 0.0
    %1176 = vmatpush.msra.mxu0 0.0
    %1177 = vmatpush.msra.mxu0 0.0
    %1178 = vmatpush.msra.mxu0 0.0
    %1179 = vmatpush.msra.mxu0 0.0
    %1180 = vmatpush.msra.mxu0 0.0
    %1181 = vmatpush.msra.mxu0 0.0
    %1182 = vmatpush.msra.mxu0 0.0
    %1183 = vmatpush.msra.mxu0 0.0
    %1184 = vmatpush.msra.mxu0 0.0
    %1185 = vmatpush.msra.mxu0 0.0
    %1186 = vmatpush.msra.mxu0 0.0
    %1187 = vmatpush.msra.mxu0 0.0
    %1188 = vmatpush.msra.mxu0 0.0
    %1189 = vmatpush.msra.mxu0 0.0
    %1190 = vmatpush.msra.mxu0 %v1170
    %1191 = vmatmul.f32.gmra.mxu0 %v1173
    %v1192 = vpop.f32.mrf.mxu0
    %v1193 = vadd.f32 0.0, %v1192
    %1194 = vdwg.mxu0
    %1195 = vrot.lane.b32.xlu0 %v1080, 64
    %v1196 = vpop.permute.xlu0 %1195
    %v1199 = vsel %vm171, %v1168, 0
    %1201 = vmatpush.msra.mxu0 0.0
    %1202 = vmatpush.msra.mxu0 0.0
    %1203 = vmatpush.msra.mxu0 0.0
    %1204 = vmatpush.msra.mxu0 0.0
    %1205 = vmatpush.msra.mxu0 0.0
    %1206 = vmatpush.msra.mxu0 0.0
    %1207 = vmatpush.msra.mxu0 0.0
    %1208 = vmatpush.msra.mxu0 0.0
    %1209 = vmatpush.msra.mxu0 0.0
    %1210 = vmatpush.msra.mxu0 0.0
    %1211 = vmatpush.msra.mxu0 0.0
    %1212 = vmatpush.msra.mxu0 0.0
    %1213 = vmatpush.msra.mxu0 0.0
    %1214 = vmatpush.msra.mxu0 0.0
    %1215 = vmatpush.msra.mxu0 0.0
    %1216 = vmatpush.msra.mxu0 %v1196
    %1217 = vmatmul.f32.gmra.mxu0 %v1199
    %v1218 = vpop.f32.mrf.mxu0
    %v1219 = vadd.f32 0.0, %v1218
    %1220 = vdwg.mxu0
    %1221 = vrot.lane.b32.xlu0 %v1082, 120
    %v1222 = vpop.permute.xlu0 %1221
    %1223 = vrot.lane.b32.xlu0 %v1077, 88
    %v1224 = vpop.permute.xlu0 %1223
    %v1225 = vsel %vm171, %v1222, 0
    %v1227 = vsel %vm171, %v1224, 0
    %1229 = vmatpush.xpose.msra.mxu0 0.0
    %1230 = vmatpush.xpose.msra.mxu0 0.0
    %1231 = vmatpush.xpose.msra.mxu0 0.0
    %1232 = vmatpush.xpose.msra.mxu0 0.0
    %1233 = vmatpush.xpose.msra.mxu0 0.0
    %1234 = vmatpush.xpose.msra.mxu0 0.0
    %1235 = vmatpush.xpose.msra.mxu0 0.0
    %1236 = vmatpush.xpose.msra.mxu0 0.0
    %1237 = vmatpush.xpose.msra.mxu0 0.0
    %1238 = vmatpush.xpose.msra.mxu0 0.0
    %1239 = vmatpush.xpose.msra.mxu0 0.0
    %1240 = vmatpush.xpose.msra.mxu0 0.0
    %1241 = vmatpush.xpose.msra.mxu0 0.0
    %1242 = vmatpush.xpose.msra.mxu0 0.0
    %1243 = vmatpush.xpose.msra.mxu0 0.0
    %1244 = vmatpush.xpose.msra.mxu0 %v1227
    %1245 = vmatmul.f32.gmra.mxu0 %v1225
    %v1246 = vpop.f32.mrf.mxu0
    %v1247 = vadd.f32 0.0, %v1246
    %1248 = vdwg.mxu0
    %1249 = vrot.lane.b32.xlu0 %v1083, 120
    %v1250 = vpop.permute.xlu0 %1249
    %1251 = vrot.lane.b32.xlu0 %v1080, 88
    %v1252 = vpop.permute.xlu0 %1251
    %v1253 = vsel %vm171, %v1250, 0
    %v1255 = vsel %vm171, %v1252, 0
    %1257 = vmatpush.xpose.msra.mxu0 0.0
    %1258 = vmatpush.xpose.msra.mxu0 0.0
    %1259 = vmatpush.xpose.msra.mxu0 0.0
    %1260 = vmatpush.xpose.msra.mxu0 0.0
    %1261 = vmatpush.xpose.msra.mxu0 0.0
    %1262 = vmatpush.xpose.msra.mxu0 0.0
    %1263 = vmatpush.xpose.msra.mxu0 0.0
    %1264 = vmatpush.xpose.msra.mxu0 0.0
    %1265 = vmatpush.xpose.msra.mxu0 0.0
    %1266 = vmatpush.xpose.msra.mxu0 0.0
    %1267 = vmatpush.xpose.msra.mxu0 0.0
    %1268 = vmatpush.xpose.msra.mxu0 0.0
    %1269 = vmatpush.xpose.msra.mxu0 0.0
    %1270 = vmatpush.xpose.msra.mxu0 0.0
    %1271 = vmatpush.xpose.msra.mxu0 0.0
    %1272 = vmatpush.xpose.msra.mxu0 %v1255
    %1273 = vmatmul.f32.gmra.mxu0 %v1253
    %v1274 = vpop.f32.mrf.mxu0
    %v1275 = vadd.f32 0.0, %v1274
    %1276 = vdwg.mxu0
    %v1277 = vsel %vm226, %v1247, -1e+30
    %v1278 = vsel %vm226, %v1275, -1e+30
    %v1279 = vsel %vm171, %v1277, -inf
    %1280 = vmax.xlane.f32.xlu0 %v1279
    %v1281 = vpop.xlane.xlu0 %1280
    %v1282 = vsel %vm171, %v1278, -inf
    %1283 = vmax.xlane.f32.xlu0 %v1282
    %v1284 = vpop.xlane.xlu0 %1283
    %v1285 = vsub.f32 %v1277, %v1281
    %v1286 = vsub.f32 %v1278, %v1284
    %v1287 = vmul.f32 %v1285, 1.442695
    %v1288 = vpow.pop %v1287
    %v1289 = vmul.f32 %v1286, 1.442695
    %v1290 = vpow.pop %v1289
    %v1291 = vsel %vm171, %v1288, 0.0
    %1292 = vadd.xlane.f32.xlu0 %v1291
    %v1293 = vpop.xlane.xlu0 %1292
    %v1294 = vsel %vm171, %v1290, 0.0
    %1295 = vadd.xlane.f32.xlu0 %v1294
    %v1296 = vpop.xlane.xlu0 %1295
    %v1297 = vrcp.pop %v1293
    %v1298 = vrcp.pop %v1296
    %v1299 = vmul.f32 %v1288, %v1297
    %v1300 = vmul.f32 %v1290, %v1298
    %1301 = vrot.lane.b32.xlu0 %v1077, 56
    %v1302 = vpop.permute.xlu0 %1301
    %v1305 = vsel %vm171, %v1299, 0
    %1307 = vmatpush.msra.mxu0 0.0
    %1308 = vmatpush.msra.mxu0 0.0
    %1309 = vmatpush.msra.mxu0 0.0
    %1310 = vmatpush.msra.mxu0 0.0
    %1311 = vmatpush.msra.mxu0 0.0
    %1312 = vmatpush.msra.mxu0 0.0
    %1313 = vmatpush.msra.mxu0 0.0
    %1314 = vmatpush.msra.mxu0 0.0
    %1315 = vmatpush.msra.mxu0 0.0
    %1316 = vmatpush.msra.mxu0 0.0
    %1317 = vmatpush.msra.mxu0 0.0
    %1318 = vmatpush.msra.mxu0 0.0
    %1319 = vmatpush.msra.mxu0 0.0
    %1320 = vmatpush.msra.mxu0 0.0
    %1321 = vmatpush.msra.mxu0 0.0
    %1322 = vmatpush.msra.mxu0 %v1302
    %1323 = vmatmul.f32.gmra.mxu0 %v1305
    %v1324 = vpop.f32.mrf.mxu0
    %v1325 = vadd.f32 0.0, %v1324
    %1326 = vdwg.mxu0
    %1327 = vrot.lane.b32.xlu0 %v1080, 56
    %v1328 = vpop.permute.xlu0 %1327
    %v1331 = vsel %vm171, %v1300, 0
    %1333 = vmatpush.msra.mxu0 0.0
    %1334 = vmatpush.msra.mxu0 0.0
    %1335 = vmatpush.msra.mxu0 0.0
    %1336 = vmatpush.msra.mxu0 0.0
    %1337 = vmatpush.msra.mxu0 0.0
    %1338 = vmatpush.msra.mxu0 0.0
    %1339 = vmatpush.msra.mxu0 0.0
    %1340 = vmatpush.msra.mxu0 0.0
    %1341 = vmatpush.msra.mxu0 0.0
    %1342 = vmatpush.msra.mxu0 0.0
    %1343 = vmatpush.msra.mxu0 0.0
    %1344 = vmatpush.msra.mxu0 0.0
    %1345 = vmatpush.msra.mxu0 0.0
    %1346 = vmatpush.msra.mxu0 0.0
    %1347 = vmatpush.msra.mxu0 0.0
    %1348 = vmatpush.msra.mxu0 %v1328
    %1349 = vmatmul.f32.gmra.mxu0 %v1331
    %v1350 = vpop.f32.mrf.mxu0
    %v1351 = vadd.f32 0.0, %v1350
    %1352 = vdwg.mxu0
    %v1354 = vsel %vm171, %v1325, 0
    %v1357 = vsel %vm171, %v1351, 0
    %1359 = vmatpush.msra.mxu0 0.0
    %1360 = vmatpush.msra.mxu0 0.0
    %1361 = vmatpush.msra.mxu0 0.0
    %1362 = vmatpush.msra.mxu0 0.0
    %1363 = vmatpush.msra.mxu0 0.0
    %1364 = vmatpush.msra.mxu0 0.0
    %1365 = vmatpush.msra.mxu0 0.0
    %1366 = vmatpush.msra.mxu0 0.0
    %1367 = vmatpush.msra.mxu0 0.0
    %1368 = vmatpush.msra.mxu0 0.0
    %1369 = vmatpush.msra.mxu0 0.0
    %1370 = vmatpush.msra.mxu0 0.0
    %1371 = vmatpush.msra.mxu0 0.0
    %1372 = vmatpush.msra.mxu0 0.0
    %1373 = vmatpush.msra.mxu0 0.0
    %1374 = vmatpush.msra.mxu0 %v1086
    %1375 = vmatmul.f32.gmra.mxu0 %v1354
    %v1376 = vpop.f32.mrf.mxu0
    %v1377 = vadd.f32 0.0, %v1376
    %1378 = vmatmul.f32.gmra.mxu0 %v1357
    %v1379 = vpop.f32.mrf.mxu0
    %v1380 = vadd.f32 0.0, %v1379
    %1381 = vdwg.mxu0
    %v1383 = vsel %vm171, %v1193, 0
    %v1386 = vsel %vm171, %v1219, 0
    %1388 = vmatpush.msra.mxu0 0.0
    %1389 = vmatpush.msra.mxu0 0.0
    %1390 = vmatpush.msra.mxu0 0.0
    %1391 = vmatpush.msra.mxu0 0.0
    %1392 = vmatpush.msra.mxu0 0.0
    %1393 = vmatpush.msra.mxu0 0.0
    %1394 = vmatpush.msra.mxu0 0.0
    %1395 = vmatpush.msra.mxu0 0.0
    %1396 = vmatpush.msra.mxu0 0.0
    %1397 = vmatpush.msra.mxu0 0.0
    %1398 = vmatpush.msra.mxu0 0.0
    %1399 = vmatpush.msra.mxu0 0.0
    %1400 = vmatpush.msra.mxu0 0.0
    %1401 = vmatpush.msra.mxu0 0.0
    %1402 = vmatpush.msra.mxu0 0.0
    %1403 = vmatpush.msra.mxu0 %v1085
    %1404 = vmatmul.f32.gmra.mxu0 %v1383
    %v1405 = vpop.f32.mrf.mxu0
    %v1406 = vadd.f32 %v1377, %v1405
    %1407 = vmatmul.f32.gmra.mxu0 %v1386
    %v1408 = vpop.f32.mrf.mxu0
    %v1409 = vadd.f32 %v1380, %v1408
    %1410 = vdwg.mxu0
    %1411 = vrot.lane.b32.xlu0 %v1082, 112
    %v1412 = vpop.permute.xlu0 %1411
    %1413 = vrot.lane.b32.xlu0 %v1077, 80
    %v1414 = vpop.permute.xlu0 %1413
    %v1415 = vsel %vm171, %v1412, 0
    %v1417 = vsel %vm171, %v1414, 0
    %1419 = vmatpush.xpose.msra.mxu0 0.0
    %1420 = vmatpush.xpose.msra.mxu0 0.0
    %1421 = vmatpush.xpose.msra.mxu0 0.0
    %1422 = vmatpush.xpose.msra.mxu0 0.0
    %1423 = vmatpush.xpose.msra.mxu0 0.0
    %1424 = vmatpush.xpose.msra.mxu0 0.0
    %1425 = vmatpush.xpose.msra.mxu0 0.0
    %1426 = vmatpush.xpose.msra.mxu0 0.0
    %1427 = vmatpush.xpose.msra.mxu0 0.0
    %1428 = vmatpush.xpose.msra.mxu0 0.0
    %1429 = vmatpush.xpose.msra.mxu0 0.0
    %1430 = vmatpush.xpose.msra.mxu0 0.0
    %1431 = vmatpush.xpose.msra.mxu0 0.0
    %1432 = vmatpush.xpose.msra.mxu0 0.0
    %1433 = vmatpush.xpose.msra.mxu0 0.0
    %1434 = vmatpush.xpose.msra.mxu0 %v1417
    %1435 = vmatmul.f32.gmra.mxu0 %v1415
    %v1436 = vpop.f32.mrf.mxu0
    %v1437 = vadd.f32 0.0, %v1436
    %1438 = vdwg.mxu0
    %1439 = vrot.lane.b32.xlu0 %v1083, 112
    %v1440 = vpop.permute.xlu0 %1439
    %1441 = vrot.lane.b32.xlu0 %v1080, 80
    %v1442 = vpop.permute.xlu0 %1441
    %v1443 = vsel %vm171, %v1440, 0
    %v1445 = vsel %vm171, %v1442, 0
    %1447 = vmatpush.xpose.msra.mxu0 0.0
    %1448 = vmatpush.xpose.msra.mxu0 0.0
    %1449 = vmatpush.xpose.msra.mxu0 0.0
    %1450 = vmatpush.xpose.msra.mxu0 0.0
    %1451 = vmatpush.xpose.msra.mxu0 0.0
    %1452 = vmatpush.xpose.msra.mxu0 0.0
    %1453 = vmatpush.xpose.msra.mxu0 0.0
    %1454 = vmatpush.xpose.msra.mxu0 0.0
    %1455 = vmatpush.xpose.msra.mxu0 0.0
    %1456 = vmatpush.xpose.msra.mxu0 0.0
    %1457 = vmatpush.xpose.msra.mxu0 0.0
    %1458 = vmatpush.xpose.msra.mxu0 0.0
    %1459 = vmatpush.xpose.msra.mxu0 0.0
    %1460 = vmatpush.xpose.msra.mxu0 0.0
    %1461 = vmatpush.xpose.msra.mxu0 0.0
    %1462 = vmatpush.xpose.msra.mxu0 %v1445
    %1463 = vmatmul.f32.gmra.mxu0 %v1443
    %v1464 = vpop.f32.mrf.mxu0
    %v1465 = vadd.f32 0.0, %v1464
    %1466 = vdwg.mxu0
    %v1467 = vsel %vm226, %v1437, -1e+30
    %v1468 = vsel %vm226, %v1465, -1e+30
    %v1469 = vsel %vm171, %v1467, -inf
    %1470 = vmax.xlane.f32.xlu0 %v1469
    %v1471 = vpop.xlane.xlu0 %1470
    %v1472 = vsel %vm171, %v1468, -inf
    %1473 = vmax.xlane.f32.xlu0 %v1472
    %v1474 = vpop.xlane.xlu0 %1473
    %v1475 = vsub.f32 %v1467, %v1471
    %v1476 = vsub.f32 %v1468, %v1474
    %v1477 = vmul.f32 %v1475, 1.442695
    %v1478 = vpow.pop %v1477
    %v1479 = vmul.f32 %v1476, 1.442695
    %v1480 = vpow.pop %v1479
    %v1481 = vsel %vm171, %v1478, 0.0
    %1482 = vadd.xlane.f32.xlu0 %v1481
    %v1483 = vpop.xlane.xlu0 %1482
    %v1484 = vsel %vm171, %v1480, 0.0
    %1485 = vadd.xlane.f32.xlu0 %v1484
    %v1486 = vpop.xlane.xlu0 %1485
    %v1487 = vrcp.pop %v1483
    %v1488 = vrcp.pop %v1486
    %v1489 = vmul.f32 %v1478, %v1487
    %v1490 = vmul.f32 %v1480, %v1488
    %1491 = vrot.lane.b32.xlu0 %v1077, 48
    %v1492 = vpop.permute.xlu0 %1491
    %v1495 = vsel %vm171, %v1489, 0
    %1497 = vmatpush.msra.mxu0 0.0
    %1498 = vmatpush.msra.mxu0 0.0
    %1499 = vmatpush.msra.mxu0 0.0
    %1500 = vmatpush.msra.mxu0 0.0
    %1501 = vmatpush.msra.mxu0 0.0
    %1502 = vmatpush.msra.mxu0 0.0
    %1503 = vmatpush.msra.mxu0 0.0
    %1504 = vmatpush.msra.mxu0 0.0
    %1505 = vmatpush.msra.mxu0 0.0
    %1506 = vmatpush.msra.mxu0 0.0
    %1507 = vmatpush.msra.mxu0 0.0
    %1508 = vmatpush.msra.mxu0 0.0
    %1509 = vmatpush.msra.mxu0 0.0
    %1510 = vmatpush.msra.mxu0 0.0
    %1511 = vmatpush.msra.mxu0 0.0
    %1512 = vmatpush.msra.mxu0 %v1492
    %1513 = vmatmul.f32.gmra.mxu0 %v1495
    %v1514 = vpop.f32.mrf.mxu0
    %v1515 = vadd.f32 0.0, %v1514
    %1516 = vdwg.mxu0
    %1517 = vrot.lane.b32.xlu0 %v1080, 48
    %v1518 = vpop.permute.xlu0 %1517
    %v1521 = vsel %vm171, %v1490, 0
    %1523 = vmatpush.msra.mxu0 0.0
    %1524 = vmatpush.msra.mxu0 0.0
    %1525 = vmatpush.msra.mxu0 0.0
    %1526 = vmatpush.msra.mxu0 0.0
    %1527 = vmatpush.msra.mxu0 0.0
    %1528 = vmatpush.msra.mxu0 0.0
    %1529 = vmatpush.msra.mxu0 0.0
    %1530 = vmatpush.msra.mxu0 0.0
    %1531 = vmatpush.msra.mxu0 0.0
    %1532 = vmatpush.msra.mxu0 0.0
    %1533 = vmatpush.msra.mxu0 0.0
    %1534 = vmatpush.msra.mxu0 0.0
    %1535 = vmatpush.msra.mxu0 0.0
    %1536 = vmatpush.msra.mxu0 0.0
    %1537 = vmatpush.msra.mxu0 0.0
    %1538 = vmatpush.msra.mxu0 %v1518
    %1539 = vmatmul.f32.gmra.mxu0 %v1521
    %v1540 = vpop.f32.mrf.mxu0
    %v1541 = vadd.f32 0.0, %v1540
    %1542 = vdwg.mxu0
    %v1544 = vsel %vm171, %v1515, 0
    %v1547 = vsel %vm171, %v1541, 0
    %1549 = vmatpush.msra.mxu0 0.0
    %1550 = vmatpush.msra.mxu0 0.0
    %1551 = vmatpush.msra.mxu0 0.0
    %1552 = vmatpush.msra.mxu0 0.0
    %1553 = vmatpush.msra.mxu0 0.0
    %1554 = vmatpush.msra.mxu0 0.0
    %1555 = vmatpush.msra.mxu0 0.0
    %1556 = vmatpush.msra.mxu0 0.0
    %1557 = vmatpush.msra.mxu0 0.0
    %1558 = vmatpush.msra.mxu0 0.0
    %1559 = vmatpush.msra.mxu0 0.0
    %1560 = vmatpush.msra.mxu0 0.0
    %1561 = vmatpush.msra.mxu0 0.0
    %1562 = vmatpush.msra.mxu0 0.0
    %1563 = vmatpush.msra.mxu0 0.0
    %1564 = vmatpush.msra.mxu0 %v1087
    %1565 = vmatmul.f32.gmra.mxu0 %v1544
    %v1566 = vpop.f32.mrf.mxu0
    %v1567 = vadd.f32 0.0, %v1566
    %1568 = vmatmul.f32.gmra.mxu0 %v1547
    %v1569 = vpop.f32.mrf.mxu0
    %v1570 = vadd.f32 0.0, %v1569
    %1571 = vdwg.mxu0
    %v1572 = vadd.f32 %v1406, %v1567
    %v1573 = vadd.f32 %v1409, %v1570
    %1574 = vrot.lane.b32.xlu0 %v1082, 104
    %v1575 = vpop.permute.xlu0 %1574
    %1576 = vrot.lane.b32.xlu0 %v1077, 72
    %v1577 = vpop.permute.xlu0 %1576
    %v1578 = vsel %vm171, %v1575, 0
    %v1580 = vsel %vm171, %v1577, 0
    %1582 = vmatpush.xpose.msra.mxu0 0.0
    %1583 = vmatpush.xpose.msra.mxu0 0.0
    %1584 = vmatpush.xpose.msra.mxu0 0.0
    %1585 = vmatpush.xpose.msra.mxu0 0.0
    %1586 = vmatpush.xpose.msra.mxu0 0.0
    %1587 = vmatpush.xpose.msra.mxu0 0.0
    %1588 = vmatpush.xpose.msra.mxu0 0.0
    %1589 = vmatpush.xpose.msra.mxu0 0.0
    %1590 = vmatpush.xpose.msra.mxu0 0.0
    %1591 = vmatpush.xpose.msra.mxu0 0.0
    %1592 = vmatpush.xpose.msra.mxu0 0.0
    %1593 = vmatpush.xpose.msra.mxu0 0.0
    %1594 = vmatpush.xpose.msra.mxu0 0.0
    %1595 = vmatpush.xpose.msra.mxu0 0.0
    %1596 = vmatpush.xpose.msra.mxu0 0.0
    %1597 = vmatpush.xpose.msra.mxu0 %v1580
    %1598 = vmatmul.f32.gmra.mxu0 %v1578
    %v1599 = vpop.f32.mrf.mxu0
    %v1600 = vadd.f32 0.0, %v1599
    %1601 = vdwg.mxu0
    %1602 = vrot.lane.b32.xlu0 %v1083, 104
    %v1603 = vpop.permute.xlu0 %1602
    %1604 = vrot.lane.b32.xlu0 %v1080, 72
    %v1605 = vpop.permute.xlu0 %1604
    %v1606 = vsel %vm171, %v1603, 0
    %v1608 = vsel %vm171, %v1605, 0
    %1610 = vmatpush.xpose.msra.mxu0 0.0
    %1611 = vmatpush.xpose.msra.mxu0 0.0
    %1612 = vmatpush.xpose.msra.mxu0 0.0
    %1613 = vmatpush.xpose.msra.mxu0 0.0
    %1614 = vmatpush.xpose.msra.mxu0 0.0
    %1615 = vmatpush.xpose.msra.mxu0 0.0
    %1616 = vmatpush.xpose.msra.mxu0 0.0
    %1617 = vmatpush.xpose.msra.mxu0 0.0
    %1618 = vmatpush.xpose.msra.mxu0 0.0
    %1619 = vmatpush.xpose.msra.mxu0 0.0
    %1620 = vmatpush.xpose.msra.mxu0 0.0
    %1621 = vmatpush.xpose.msra.mxu0 0.0
    %1622 = vmatpush.xpose.msra.mxu0 0.0
    %1623 = vmatpush.xpose.msra.mxu0 0.0
    %1624 = vmatpush.xpose.msra.mxu0 0.0
    %1625 = vmatpush.xpose.msra.mxu0 %v1608
    %1626 = vmatmul.f32.gmra.mxu0 %v1606
    %v1627 = vpop.f32.mrf.mxu0
    %v1628 = vadd.f32 0.0, %v1627
    %1629 = vdwg.mxu0
    %v1630 = vsel %vm226, %v1600, -1e+30
    %v1631 = vsel %vm226, %v1628, -1e+30
    %v1632 = vsel %vm171, %v1630, -inf
    %1633 = vmax.xlane.f32.xlu0 %v1632
    %v1634 = vpop.xlane.xlu0 %1633
    %v1635 = vsel %vm171, %v1631, -inf
    %1636 = vmax.xlane.f32.xlu0 %v1635
    %v1637 = vpop.xlane.xlu0 %1636
    %v1638 = vsub.f32 %v1630, %v1634
    %v1639 = vsub.f32 %v1631, %v1637
    %v1640 = vmul.f32 %v1638, 1.442695
    %v1641 = vpow.pop %v1640
    %v1642 = vmul.f32 %v1639, 1.442695
    %v1643 = vpow.pop %v1642
    %v1644 = vsel %vm171, %v1641, 0.0
    %1645 = vadd.xlane.f32.xlu0 %v1644
    %v1646 = vpop.xlane.xlu0 %1645
    %v1647 = vsel %vm171, %v1643, 0.0
    %1648 = vadd.xlane.f32.xlu0 %v1647
    %v1649 = vpop.xlane.xlu0 %1648
    %v1650 = vrcp.pop %v1646
    %v1651 = vrcp.pop %v1649
    %v1652 = vmul.f32 %v1641, %v1650
    %v1653 = vmul.f32 %v1643, %v1651
    %1654 = vrot.lane.b32.xlu0 %v1077, 40
    %v1655 = vpop.permute.xlu0 %1654
    %v1658 = vsel %vm171, %v1652, 0
    %1660 = vmatpush.msra.mxu0 0.0
    %1661 = vmatpush.msra.mxu0 0.0
    %1662 = vmatpush.msra.mxu0 0.0
    %1663 = vmatpush.msra.mxu0 0.0
    %1664 = vmatpush.msra.mxu0 0.0
    %1665 = vmatpush.msra.mxu0 0.0
    %1666 = vmatpush.msra.mxu0 0.0
    %1667 = vmatpush.msra.mxu0 0.0
    %1668 = vmatpush.msra.mxu0 0.0
    %1669 = vmatpush.msra.mxu0 0.0
    %1670 = vmatpush.msra.mxu0 0.0
    %1671 = vmatpush.msra.mxu0 0.0
    %1672 = vmatpush.msra.mxu0 0.0
    %1673 = vmatpush.msra.mxu0 0.0
    %1674 = vmatpush.msra.mxu0 0.0
    %1675 = vmatpush.msra.mxu0 %v1655
    %1676 = vmatmul.f32.gmra.mxu0 %v1658
    %v1677 = vpop.f32.mrf.mxu0
    %v1678 = vadd.f32 0.0, %v1677
    %1679 = vdwg.mxu0
    %1680 = vrot.lane.b32.xlu0 %v1080, 40
    %v1681 = vpop.permute.xlu0 %1680
    %v1684 = vsel %vm171, %v1653, 0
    %1686 = vmatpush.msra.mxu0 0.0
    %1687 = vmatpush.msra.mxu0 0.0
    %1688 = vmatpush.msra.mxu0 0.0
    %1689 = vmatpush.msra.mxu0 0.0
    %1690 = vmatpush.msra.mxu0 0.0
    %1691 = vmatpush.msra.mxu0 0.0
    %1692 = vmatpush.msra.mxu0 0.0
    %1693 = vmatpush.msra.mxu0 0.0
    %1694 = vmatpush.msra.mxu0 0.0
    %1695 = vmatpush.msra.mxu0 0.0
    %1696 = vmatpush.msra.mxu0 0.0
    %1697 = vmatpush.msra.mxu0 0.0
    %1698 = vmatpush.msra.mxu0 0.0
    %1699 = vmatpush.msra.mxu0 0.0
    %1700 = vmatpush.msra.mxu0 0.0
    %1701 = vmatpush.msra.mxu0 %v1681
    %1702 = vmatmul.f32.gmra.mxu0 %v1684
    %v1703 = vpop.f32.mrf.mxu0
    %v1704 = vadd.f32 0.0, %v1703
    %1705 = vdwg.mxu0
    %v1707 = vsel %vm171, %v1678, 0
    %v1710 = vsel %vm171, %v1704, 0
    %1712 = vmatpush.msra.mxu0 0.0
    %1713 = vmatpush.msra.mxu0 0.0
    %1714 = vmatpush.msra.mxu0 0.0
    %1715 = vmatpush.msra.mxu0 0.0
    %1716 = vmatpush.msra.mxu0 0.0
    %1717 = vmatpush.msra.mxu0 0.0
    %1718 = vmatpush.msra.mxu0 0.0
    %1719 = vmatpush.msra.mxu0 0.0
    %1720 = vmatpush.msra.mxu0 0.0
    %1721 = vmatpush.msra.mxu0 0.0
    %1722 = vmatpush.msra.mxu0 0.0
    %1723 = vmatpush.msra.mxu0 0.0
    %1724 = vmatpush.msra.mxu0 0.0
    %1725 = vmatpush.msra.mxu0 0.0
    %1726 = vmatpush.msra.mxu0 0.0
    %1727 = vmatpush.msra.mxu0 %v1088
    %1728 = vmatmul.f32.gmra.mxu0 %v1707
    %v1729 = vpop.f32.mrf.mxu0
    %v1730 = vadd.f32 0.0, %v1729
    %1731 = vmatmul.f32.gmra.mxu0 %v1710
    %v1732 = vpop.f32.mrf.mxu0
    %v1733 = vadd.f32 0.0, %v1732
    %1734 = vdwg.mxu0
    %v1735 = vadd.f32 %v1572, %v1730
    %v1736 = vadd.f32 %v1573, %v1733
    %v1737 = vadd.f32 %v983, %v1735
    %v1738 = vadd.f32 %v984, %v1736
    %s1739 = scalar_lea.vmem %s6, 1
    %v1740 = vld [vmem:[%s1739] sm:$0x1]
    %v1742 = vperm.slane %v1740, 0
    %v1744 = vadd.f32 %v1737, %v1742
    %v1745 = vadd.f32 %v1738, %v1742
    %s1746 = scalar_lea.vmem %s7, 1
    %v1747 = vld [vmem:[%s1746] sm:$0x1]
    %s1748 = scalar_lea.vmem %s8, 1
    %v1749 = vld [vmem:[%s1748] sm:$0x1]
    %v1750 = vsel %vm63, %v1744, 0.0
    %1751 = vadd.xlane.f32.xlu0 %v1750
    %v1752 = vpop.xlane.xlu0 %1751
    %v1753 = vsel %vm63, %v1745, 0.0
    %1754 = vadd.xlane.f32.xlu0 %v1753
    %v1755 = vpop.xlane.xlu0 %1754
    %v1756 = vmul.f32 %v1752, %v76
    %v1757 = vmul.f32 %v1755, %v76
    %v1758 = vsub.f32 %v1744, %v1756
    %v1759 = vsub.f32 %v1745, %v1757
    %v1760 = vmul.f32 %v1758, %v1758
    %v1761 = vmul.f32 %v1759, %v1759
    %v1762 = vsel %vm63, %v1760, 0.0
    %1763 = vadd.xlane.f32.xlu0 %v1762
    %v1764 = vpop.xlane.xlu0 %1763
    %v1765 = vsel %vm63, %v1761, 0.0
    %1766 = vadd.xlane.f32.xlu0 %v1765
    %v1767 = vpop.xlane.xlu0 %1766
    %v1768 = vmul.f32 %v1764, %v76
    %v1769 = vmul.f32 %v1767, %v76
    %v1770 = vadd.f32 %v1768, 1e-05
    %v1771 = vadd.f32 %v1769, 1e-05
    %v1772 = vrsqrt.pop %v1770
    %v1773 = vmul.f32 %v1772, %v1770
    %v1774 = vmul.f32 %v1773, %v1772
    %v1775 = vmul.f32 0.5, %v1774
    %v1776 = vsub.f32 1.5, %v1775
    %v1777 = vmul.f32 %v1772, %v1776
    %vm1778 = vweird.f32 %v1770
    %vm1779 = vweird.f32 %v1772
    %vm1780 = vmor %vm1778, %vm1779
    %v1781 = vsel %vm1780, %v1772, %v1777
    %v1782 = vrsqrt.pop %v1771
    %v1783 = vmul.f32 %v1782, %v1771
    %v1784 = vmul.f32 %v1783, %v1782
    %v1785 = vmul.f32 0.5, %v1784
    %v1786 = vsub.f32 1.5, %v1785
    %v1787 = vmul.f32 %v1782, %v1786
    %vm1788 = vweird.f32 %v1771
    %vm1789 = vweird.f32 %v1782
    %vm1790 = vmor %vm1788, %vm1789
    %v1791 = vsel %vm1790, %v1782, %v1787
    %v1792 = vmul.f32 %v1758, %v1781
    %v1793 = vmul.f32 %v1759, %v1791
    %v1795 = vperm.slane %v1747, 0
    %v1797 = vmul.f32 %v1792, %v1795
    %v1798 = vmul.f32 %v1793, %v1795
    %v1800 = vperm.slane %v1749, 0
    %v1802 = vadd.f32 %v1797, %v1800
    %v1803 = vadd.f32 %v1798, %v1800
    %s1804 = scalar_lea.vmem %s9, 32
    %v1805 = vld [vmem:[%s1804] sm:$0xff]
    %v1806 = vld [vmem:[%s1804 + $0x8] sm:$0xff]
    %v1807 = vld [vmem:[%s1804 + $0x10] sm:$0xff]
    %v1808 = vld [vmem:[%s1804 + $0x18] sm:$0xff]
    %s1809 = scalar_lea.vmem %s10, 1
    %v1810 = vld [vmem:[%s1809] sm:$0x1]
    %v1812 = vperm.slane %v1810, 0
    %v1815 = vsel %vm63, %v1802, 0
    %v1818 = vsel %vm63, %v1803, 0
    %1820 = vmatpush.msra.mxu0 0.0
    %1821 = vmatpush.msra.mxu0 0.0
    %1822 = vmatpush.msra.mxu0 0.0
    %1823 = vmatpush.msra.mxu0 0.0
    %1824 = vmatpush.msra.mxu0 0.0
    %1825 = vmatpush.msra.mxu0 0.0
    %1826 = vmatpush.msra.mxu0 0.0
    %1827 = vmatpush.msra.mxu0 0.0
    %1828 = vmatpush.msra.mxu0 0.0
    %1829 = vmatpush.msra.mxu0 0.0
    %1830 = vmatpush.msra.mxu0 0.0
    %1831 = vmatpush.msra.mxu0 0.0
    %1832 = vmatpush.msra.mxu0 %v1808
    %1833 = vmatpush.msra.mxu0 %v1807
    %1834 = vmatpush.msra.mxu0 %v1806
    %1835 = vmatpush.msra.mxu0 %v1805
    %1836 = vmatmul.f32.gmra.mxu0 %v1815
    %v1837 = vpop.f32.mrf.mxu0
    %v1838 = vadd.f32 %v1812, %v1837
    %1839 = vmatmul.f32.gmra.mxu0 %v1818
    %v1840 = vpop.f32.mrf.mxu0
    %v1841 = vadd.f32 %v1812, %v1840
    %1842 = vdwg.mxu0
    %v1843 = vmul.f32 %v1838, 0.5
    %v1844 = vmul.f32 %v1841, 0.5
    %v1845 = vmul.f32 %v1838, 0.044715
    %v1846 = vmul.f32 %v1841, 0.044715
    %v1847 = vmul.f32 %v1845, %v1838
    %v1848 = vmul.f32 %v1846, %v1841
    %v1849 = vmul.f32 %v1847, %v1838
    %v1850 = vmul.f32 %v1848, %v1841
    %v1851 = vadd.f32 %v1838, %v1849
    %v1852 = vadd.f32 %v1841, %v1850
    %v1853 = vmul.f32 %v1851, 0.7978846
    %v1854 = vmul.f32 %v1852, 0.7978846
    %v1855 = vtanh.pop %v1853
    %v1856 = vtanh.pop %v1854
    %v1857 = vadd.f32 %v1855, 1.0
    %v1858 = vadd.f32 %v1856, 1.0
    %v1859 = vmul.f32 %v1843, %v1857
    %v1860 = vmul.f32 %v1844, %v1858
    %s1861 = scalar_lea.vmem %s11, 128
    %v1862 = vld [vmem:[%s1861] sm:$0xff]
    %v1863 = vld [vmem:[%s1861 + $0x8] sm:$0xff]
    %v1864 = vld [vmem:[%s1861 + $0x10] sm:$0xff]
    %v1865 = vld [vmem:[%s1861 + $0x18] sm:$0xff]
    %v1866 = vld [vmem:[%s1861 + $0x20] sm:$0xff]
    %v1867 = vld [vmem:[%s1861 + $0x28] sm:$0xff]
    %v1868 = vld [vmem:[%s1861 + $0x30] sm:$0xff]
    %v1869 = vld [vmem:[%s1861 + $0x38] sm:$0xff]
    %v1870 = vld [vmem:[%s1861 + $0x40] sm:$0xff]
    %v1871 = vld [vmem:[%s1861 + $0x48] sm:$0xff]
    %v1872 = vld [vmem:[%s1861 + $0x50] sm:$0xff]
    %v1873 = vld [vmem:[%s1861 + $0x58] sm:$0xff]
    %v1874 = vld [vmem:[%s1861 + $0x60] sm:$0xff]
    %v1875 = vld [vmem:[%s1861 + $0x68] sm:$0xff]
    %v1876 = vld [vmem:[%s1861 + $0x70] sm:$0xff]
    %v1877 = vld [vmem:[%s1861 + $0x78] sm:$0xff]
    %1878 = vmatpush.msra.mxu0 %v1877
    %1879 = vmatpush.msra.mxu0 %v1876
    %1880 = vmatpush.msra.mxu0 %v1875
    %1881 = vmatpush.msra.mxu0 %v1874
    %1882 = vmatpush.msra.mxu0 %v1873
    %1883 = vmatpush.msra.mxu0 %v1872
    %1884 = vmatpush.msra.mxu0 %v1871
    %1885 = vmatpush.msra.mxu0 %v1870
    %1886 = vmatpush.msra.mxu0 %v1869
    %1887 = vmatpush.msra.mxu0 %v1868
    %1888 = vmatpush.msra.mxu0 %v1867
    %1889 = vmatpush.msra.mxu0 %v1866
    %1890 = vmatpush.msra.mxu0 %v1865
    %1891 = vmatpush.msra.mxu0 %v1864
    %1892 = vmatpush.msra.mxu0 %v1863
    %1893 = vmatpush.msra.mxu0 %v1862
    %1894 = vmatmul.f32.gmra.mxu0 %v1859
    %v1895 = vpop.f32.mrf.mxu0
    %v1896 = vadd.f32 0.0, %v1895
    %1897 = vmatmul.f32.gmra.mxu0 %v1860
    %v1898 = vpop.f32.mrf.mxu0
    %v1899 = vadd.f32 0.0, %v1898
    %1900 = vdwg.mxu0
    %v1901 = vadd.f32 %v1744, %v1896
    %v1902 = vadd.f32 %v1745, %v1899
    %s1903 = scalar_lea.vmem %s12, 1
    %v1904 = vld [vmem:[%s1903] sm:$0x1]
    %v1906 = vperm.slane %v1904, 0
    %v1908 = vadd.f32 %v1901, %v1906
    %v1909 = vadd.f32 %v1902, %v1906
    %v1910 = vld [vmem:[%s13] sm:$0x1]
    %v1911 = vld [vmem:[%s14] sm:$0x1]
    %v1912 = vsel %vm63, %v1908, 0.0
    %1913 = vadd.xlane.f32.xlu0 %v1912
    %v1914 = vpop.xlane.xlu0 %1913
    %v1915 = vsel %vm63, %v1909, 0.0
    %1916 = vadd.xlane.f32.xlu0 %v1915
    %v1917 = vpop.xlane.xlu0 %1916
    %v1918 = vmul.f32 %v1914, %v76
    %v1919 = vmul.f32 %v1917, %v76
    %v1920 = vsub.f32 %v1908, %v1918
    %v1921 = vsub.f32 %v1909, %v1919
    %v1922 = vmul.f32 %v1920, %v1920
    %v1923 = vmul.f32 %v1921, %v1921
    %v1924 = vsel %vm63, %v1922, 0.0
    %1925 = vadd.xlane.f32.xlu0 %v1924
    %v1926 = vpop.xlane.xlu0 %1925
    %v1927 = vsel %vm63, %v1923, 0.0
    %1928 = vadd.xlane.f32.xlu0 %v1927
    %v1929 = vpop.xlane.xlu0 %1928
    %v1930 = vmul.f32 %v1926, %v76
    %v1931 = vmul.f32 %v1929, %v76
    %v1932 = vadd.f32 %v1930, 1e-05
    %v1933 = vadd.f32 %v1931, 1e-05
    %v1934 = vrsqrt.pop %v1932
    %v1935 = vmul.f32 %v1934, %v1932
    %v1936 = vmul.f32 %v1935, %v1934
    %v1937 = vmul.f32 0.5, %v1936
    %v1938 = vsub.f32 1.5, %v1937
    %v1939 = vmul.f32 %v1934, %v1938
    %vm1940 = vweird.f32 %v1932
    %vm1941 = vweird.f32 %v1934
    %vm1942 = vmor %vm1940, %vm1941
    %v1943 = vsel %vm1942, %v1934, %v1939
    %v1944 = vrsqrt.pop %v1933
    %v1945 = vmul.f32 %v1944, %v1933
    %v1946 = vmul.f32 %v1945, %v1944
    %v1947 = vmul.f32 0.5, %v1946
    %v1948 = vsub.f32 1.5, %v1947
    %v1949 = vmul.f32 %v1944, %v1948
    %vm1950 = vweird.f32 %v1933
    %vm1951 = vweird.f32 %v1944
    %vm1952 = vmor %vm1950, %vm1951
    %v1953 = vsel %vm1952, %v1944, %v1949
    %v1954 = vmul.f32 %v1920, %v1943
    %v1955 = vmul.f32 %v1921, %v1953
    %v1957 = vperm.slane %v1910, 0
    %v1959 = vmul.f32 %v1954, %v1957
    %v1960 = vmul.f32 %v1955, %v1957
    %v1962 = vperm.slane %v1911, 0
    %v1964 = vadd.f32 %v1959, %v1962
    %v1965 = vadd.f32 %v1960, %v1962
    %v1966 = vld [vmem:[%s15] sm:$0xff]
    %v1967 = vld [vmem:[%s15 + $0x8] sm:$0xff]
    %v1968 = vld [vmem:[%s15 + $0x10] sm:$0xff]
    %v1969 = vld [vmem:[%s15 + $0x18] sm:$0xff]
    %v1972 = vrot.slane %v1964, 7
    %v1973 = vrot.slane %v1965, 6
    %vm1974 = vcmask 1041409
    %v1975 = vsel %vm1974, %v1973, %v1972
    %v1976 = vsel %vm63, %v1975, 0
    %1978 = vmatpush.msra.mxu0 0.0
    %1979 = vmatpush.msra.mxu0 0.0
    %1980 = vmatpush.msra.mxu0 0.0
    %1981 = vmatpush.msra.mxu0 0.0
    %1982 = vmatpush.msra.mxu0 0.0
    %1983 = vmatpush.msra.mxu0 0.0
    %1984 = vmatpush.msra.mxu0 0.0
    %1985 = vmatpush.msra.mxu0 0.0
    %1986 = vmatpush.msra.mxu0 0.0
    %1987 = vmatpush.msra.mxu0 0.0
    %1988 = vmatpush.msra.mxu0 0.0
    %1989 = vmatpush.msra.mxu0 0.0
    %1990 = vmatpush.msra.mxu0 %v1969
    %1991 = vmatpush.msra.mxu0 %v1968
    %1992 = vmatpush.msra.mxu0 %v1967
    %1993 = vmatpush.msra.mxu0 %v1966
    %1994 = vmatmul.f32.gmra.mxu0 %v1976
    %v1995 = vpop.f32.mrf.mxu0
    %v1996 = vadd.f32 0.0, %v1995
    %1997 = vdwg.mxu0
    %1998 = vst [vmem:[#allocation2] sm:$0x3] %v1996
    // Predicated region
    $region66: #{tpu_custom_call.1} parent=1 // pred_check
      _
    $region67: #{tpu_custom_call.1} parent=1 // pred_check_branch
      %2000 = sbr.rel (0) target = $region69
    $region68: #{tpu_custom_call.1} parent=1 // pred_region
      %2002 = vsyncadd [#allocation3], 0
      %s2004 = sshll.u32 [#allocation2], 4
      %s2005 = int_to_ptr.vmem [resolvable:$true] %s2004
      %s2006 = sshll.u32 %s16, 4
      %s2007 = int_to_ptr.hbm [resolvable:$true] %s2006
      %2009 = dma.vmem_to_hbm [thread:$0]  %s2005, 32, %s2007, [#allocation3]
    $region69: #{tpu_custom_call.1} parent=1 // pred_fallthru
      _
    // Predicated region
    $region70: #{tpu_custom_call.1} parent=1 // pred_check
      _
    $region71: #{tpu_custom_call.1} parent=1 // pred_check_branch
      %2011 = sbr.rel (0) target = $region73
    $region72: #{tpu_custom_call.1} parent=1 // pred_region
      %2013 = dma.done [#allocation3], 32
    $region73: #{tpu_custom_call.1} parent=1 // pred_fallthru
      _
    %2014 = vsyncpa [#allocation3], 1

</llo_original>
